<compile_context>
chip_gen: v6e
topology: v6e:2x2x1
jax: 0.10.0
libtpu: 0.0.40
codegen_flags: <defaults>
</compile_context>

<pallas_src>
import math

import jax
import jax.numpy as jnp
from jax import lax
from jax.experimental import pallas as pl
from jax.experimental.pallas import tpu as pltpu

# ---- model hyper-parameters (small, consistent with the module) -------------
D_MODEL = 32
NUM_HEADS = 4
HEAD_DIM = D_MODEL // NUM_HEADS
D_FF = 4 * D_MODEL
EPS = 1e-5                         # nn.LayerNorm default
FUSED_W = 2 * 128                  # lane-padded width of the fused [FF1 | QKV] block


def _gelu(x):
    # TODO(synk): nn.GELU() default is the exact erf form; erf lowering is not
    # guaranteed in Mosaic, so the tanh approximation is used (max abs err ~3e-3).
    c = math.sqrt(2.0 / math.pi)
    return 0.5 * x * (1.0 + jnp.tanh(c * (x + 0.044715 * x * x * x)))


# -----------------------------------------------------------------------------
# Pallas kernel factory: one grid step per batch *tile* (TB sequences).  The
# whole block (state proj, layernorm, multi-head self-attention, feed-forward,
# residuals) runs on VMEM tiles for those TB sequences.  `has_mask` selects a
# trace-time specialization without the mask input.
# -----------------------------------------------------------------------------
def _make_kernel(has_mask):
    def kernel(*refs):
        if has_mask:
            (x_ref, state_ref, mask_ref,
             sw_ref, wfused_ref, wo_ref, w2_ref, vec_ref, out_ref) = refs
        else:
            (x_ref, state_ref,
             sw_ref, wfused_ref, wo_ref, w2_ref, vec_ref, out_ref) = refs

        TB, S, D = x_ref.shape
        M = TB * S
        x = x_ref[...].reshape(M, D)
        st = state_ref[...].reshape(M, D)

        # Packed per-channel vectors (one resident (4, 256) tile).
        bfused = vec_ref[0:1, :]        # [bf1' | bqkv' | 0] (LN affines folded in)
        sb = vec_ref[1:2, :D]
        bo = vec_ref[2:3, :D]
        bf2 = vec_ref[3:4, :D]

        # recurrent_state = state_proj(recurrent_state); x = x + recurrent_state
        x2 = x + jnp.dot(st, sw_ref[...], preferred_element_type=jnp.float32) + sb

        # ---- shared LayerNorm statistics (norm1 and norm2 both see x2) ------
        # The affine parts of both norms are folded into wfused / bfused.
        mu = jnp.mean(x2, axis=-1, keepdims=True)
        xc = x2 - mu
        var = jnp.mean(xc * xc, axis=-1, keepdims=True)
        xhat = xc * lax.rsqrt(var + EPS)

        # ---- one fused projection: xhat @ [g2*W1 | g1*Wq/sqrt(Dh) | g1*Wk | g1*Wv]
        fused = jnp.dot(xhat, wfused_ref[...],
                        preferred_element_type=jnp.float32) + bfused
        ffh = fused[:, :D_FF]                                     # FF1 output
        q = fused[:, D_FF:D_FF + D].reshape(TB, S, D)
        k = fused[:, D_FF + D:D_FF + 2 * D].reshape(TB, S, D)
        v = fused[:, D_FF + 2 * D:D_FF + 3 * D].reshape(TB, S, D)

        if has_mask:
            mask = mask_ref[...]                                  # (1 or TB, S, S)

        # ---- attended = MultiHeadAttention(norm1(x), mask) -------------------
        # 1/sqrt(HEAD_DIM) already folded into the Wq columns.
        # TODO(synk): a head-major batched dot would merge the 4 softmaxes but
        # needs a (TB,S,H,Dh)->(TB*H,S,Dh) relayout whose Mosaic lowering is
        # not guaranteed at these shapes; keep the single-batch-dim einsums and
        # hoist the output projection out of the head loop instead.
        ctx_heads = []
        for hd in range(NUM_HEADS):
            sl = slice(hd * HEAD_DIM, (hd + 1) * HEAD_DIM)
            s_h = jnp.einsum("bqd,bkd->bqk", q[..., sl], k[..., sl],
                             preferred_element_type=jnp.float32)
            if has_mask:
                s_h = s_h + mask                                  # broadcasts (1,S,S)
            s_h = s_h - jnp.max(s_h, axis=-1, keepdims=True)
            p = jnp.exp(s_h)
            p = p / jnp.sum(p, axis=-1, keepdims=True)
            ctx_heads.append(jnp.einsum("bqk,bkd->bqd", p, v[..., sl],
                                        preferred_element_type=jnp.float32))
        ctx = jnp.concatenate(ctx_heads, axis=-1).reshape(M, D)
        attn = jnp.dot(ctx, wo_ref[...], preferred_element_type=jnp.float32) + bo

        # ---- feed_forward(norm2(x)) — FF1 already computed in the fused matmul
        ff = _gelu(ffh)
        ff = jnp.dot(ff, w2_ref[...], preferred_element_type=jnp.float32) + bf2
        # Dropout is identity in eval mode.

        out = x2 + attn + ff
        # Lane-dense single store: [output | new_state] along last dim (64 lanes).
        out_ref[...] = jnp.concatenate([out, x2], axis=-1).reshape(TB, S, 2 * D)

    return kernel


# -----------------------------------------------------------------------------
# Wrapper
# -----------------------------------------------------------------------------
def recurrent_block(x, state, params, mask=None, block_b=None):
    B, S, D = x.shape
    assert D == D_MODEL
    x = x.astype(jnp.float32)
    state = state.astype(jnp.float32)

    # --- batch tile: many sequences per grid step (amortize per-step cost).
    # No forced >=2-step split (v5e/v6e are single-TC: splitting only adds
    # overhead).  Cap the tile so per-sequence live data stays well inside VMEM.
    if block_b is None:
        per_seq_bytes = 4 * (8 * S * D + 6 * S * S + 2 * S * FUSED_W)
        tb = int(max(1, min(B, 64, (16 << 20) // max(per_seq_bytes, 1))))
    else:
        tb = block_b
    nb = pl.cdiv(B, tb)
    Bp = nb * tb

    def pad_b(a):
        if Bp == B:
            return a
        return jnp.pad(a, ((0, Bp - B),) + ((0, 0),) * (a.ndim - 1))

    xp, sp = pad_b(x), pad_b(state)

    # --- fold LayerNorm affines + head scale into the weights -----------------
    g1, be1 = params["g1"].reshape(-1), params["be1"].reshape(-1)
    g2, be2 = params["g2"].reshape(-1), params["be2"].reshape(-1)
    scale = 1.0 / math.sqrt(HEAD_DIM)

    wqkv = jnp.concatenate(
        [params["wq"] * scale, params["wk"], params["wv"]], axis=1)       # (D, 3D)
    bqkv = jnp.concatenate(
        [params["bq"].reshape(-1) * scale,
         params["bk"].reshape(-1), params["bv"].reshape(-1)])             # (3D,)
    wqkv_f = g1[:, None] * wqkv
    bqkv_f = be1 @ wqkv + bqkv
    w1_f = g2[:, None] * params["w1"]
    bf1_f = be2 @ params["w1"] + params["bf1"].reshape(-1)

    # fused [FF1 | QKV] weight, lane-padded to FUSED_W (padding columns are 0)
    wfused = jnp.zeros((D, FUSED_W), jnp.float32)
    wfused = wfused.at[:, :D_FF].set(w1_f)
    wfused = wfused.at[:, D_FF:D_FF + 3 * D].set(wqkv_f)
    bfused = jnp.zeros((FUSED_W,), jnp.float32)
    bfused = bfused.at[:D_FF].set(bf1_f)
    bfused = bfused.at[D_FF:D_FF + 3 * D].set(bqkv_f)

    def row(v):
        v = v.reshape(-1)
        return jnp.pad(v, (0, FUSED_W - v.shape[0]))

    vecs = jnp.stack([bfused, row(params["sb"]), row(params["bo"]),
                      row(params["bf2"])])                                # (4, 256)

    const = lambda shape: pl.BlockSpec(shape, lambda i: (0, 0))

    in_specs = [
        pl.BlockSpec((tb, S, D), lambda i: (i, 0, 0)),    # x
        pl.BlockSpec((tb, S, D), lambda i: (i, 0, 0)),    # recurrent_state
    ]
    args = [xp, sp]

    # --- mask: specialize the kernel (drop input + adds) when mask is None ----
    has_mask = mask is not None
    if has_mask:
        mask = mask.astype(jnp.float32)
        if mask.ndim == 2:
            mask = mask[None]
        if mask.shape[0] == 1:
            in_specs.append(pl.BlockSpec((1, S, S), lambda i: (0, 0, 0)))  # resident
            args.append(mask)
        else:
            in_specs.append(pl.BlockSpec((tb, S, S), lambda i: (i, 0, 0)))
            args.append(pad_b(mask))

    in_specs += [
        const((D, D)),            # state_proj W
        const((D, FUSED_W)),      # fused [W1' | Wqkv'] (LN affines / scale folded)
        const((D, D)),            # Wo
        const((D_FF, D)),         # FF W2
        const((4, FUSED_W)),      # packed biases
    ]
    args += [params["sw"], wfused, params["wo"], params["w2"], vecs]

    out_specs = pl.BlockSpec((tb, S, 2 * D), lambda i: (i, 0, 0))
    out_shape = jax.ShapeDtypeStruct((Bp, S, 2 * D), jnp.float32)

    y = pl.pallas_call(
        _make_kernel(has_mask),
        out_shape=out_shape,
        grid_spec=pltpu.PrefetchScalarGridSpec(
            num_scalar_prefetch=0,
            grid=(nb,),
            in_specs=in_specs,
            out_specs=out_specs,
        ),
        compiler_params=pltpu.CompilerParams(
            dimension_semantics=("parallel",),
            vmem_limit_bytes=32 * 1024 * 1024,   # explicit; >= default on all gens
        ),
    )(*args)

    y = y[:B]
    return y[..., :D], y[..., D:]              # (x2 + attn + ff, x2)


# -----------------------------------------------------------------------------
# Pure-JAX reference (same math as the PyTorch module, un-folded weights).
# -----------------------------------------------------------------------------
def reference_block(x, state, p, mask=None):
    B, S, D = x.shape
    if mask is None:
        mask = jnp.zeros((B, S, S), jnp.float32)
    elif mask.ndim == 2:
        mask = jnp.broadcast_to(mask[None], (B, S, S))
    elif mask.shape[0] == 1:
        mask = jnp.broadcast_to(mask, (B, S, S))

    def ln(z, g, b):
        mu = z.mean(-1, keepdims=True)
        var = ((z - mu) ** 2).mean(-1, keepdims=True)
        return (z - mu) * lax.rsqrt(var + EPS) * g + b

    x2 = x + (state @ p["sw"] + p["sb"])
    h = ln(x2, p["g1"], p["be1"])
    q = (h @ p["wq"] + p["bq"]).reshape(B, S, NUM_HEADS, HEAD_DIM).transpose(0, 2, 1, 3)
    k = (h @ p["wk"] + p["bk"]).reshape(B, S, NUM_HEADS, HEAD_DIM).transpose(0, 2, 1, 3)
    v = (h @ p["wv"] + p["bv"]).reshape(B, S, NUM_HEADS, HEAD_DIM).transpose(0, 2, 1, 3)
    scores = jnp.einsum("bhqd,bhkd->bhqk", q, k) / math.sqrt(HEAD_DIM)
    scores = scores + mask[:, None, :, :]
    pr = jax.nn.softmax(scores, axis=-1)
    ao = jnp.einsum("bhqk,bhkd->bhqd", pr, v).transpose(0, 2, 1, 3).reshape(B, S, D)
    attn = ao @ p["wo"] + p["bo"]
    h2 = ln(x2, p["g2"], p["be2"])
    ff = _gelu(h2 @ p["w1"] + p["bf1"]) @ p["w2"] + p["bf2"]
    return x2 + attn + ff, x2


def init_params(key):
    ks = jax.random.split(key, 8)
    nrm = lambda k, s: (0.02 * jax.random.normal(k, s)).astype(jnp.float32)
    zeros = lambda s: jnp.zeros(s, jnp.float32)
    ones = lambda s: jnp.ones(s, jnp.float32)
    return dict(
        sw=nrm(ks[0], (D_MODEL, D_MODEL)), sb=zeros((1, D_MODEL)),
        g1=ones((1, D_MODEL)), be1=zeros((1, D_MODEL)),
        g2=ones((1, D_MODEL)), be2=zeros((1, D_MODEL)),
        wq=nrm(ks[1], (D_MODEL, D_MODEL)), bq=zeros((1, D_MODEL)),
        wk=nrm(ks[2], (D_MODEL, D_MODEL)), bk=zeros((1, D_MODEL)),
        wv=nrm(ks[3], (D_MODEL, D_MODEL)), bv=zeros((1, D_MODEL)),
        wo=nrm(ks[4], (D_MODEL, D_MODEL)), bo=zeros((1, D_MODEL)),
        w1=nrm(ks[5], (D_MODEL, D_FF)), bf1=zeros((1, D_FF)),
        w2=nrm(ks[6], (D_FF, D_MODEL)), bf2=zeros((1, D_MODEL)),
    )


if __name__ == "__main__":
    key = jax.random.PRNGKey(0)
    kx, ks, kp = jax.random.split(key, 3)
    B, S = 2, 8
    x = jax.random.normal(kx, (B, S, D_MODEL), jnp.float32)
    state = jax.random.normal(ks, (B, S, D_MODEL), jnp.float32)
    params = init_params(kp)

    # --- no-mask path (mask-free specialized kernel) ---
    out, new_state = recurrent_block(x, state, params, mask=None)
    jax.block_until_ready(out)
    jax.block_until_ready(new_state)
    ref_out, ref_new = reference_block(x, state, params, mask=None)
    assert jnp.allclose(out, ref_out, atol=1e-2, rtol=1e-2), "output mismatch"
    assert jnp.allclose(new_state, ref_new, atol=1e-2, rtol=1e-2), "state mismatch"

    # --- causal-mask path (per-batch additive mask) ---
    causal = jnp.where(jnp.arange(S)[None, :] <= jnp.arange(S)[:, None], 0.0, -1e9)
    mask = jnp.broadcast_to(causal, (B, S, S)).astype(jnp.float32)
    out_m, new_m = recurrent_block(x, state, params, mask=mask)
    jax.block_until_ready(out_m)
    ref_out_m, ref_new_m = reference_block(x, state, params, mask=mask)
    assert jnp.allclose(out_m, ref_out_m, atol=1e-2, rtol=1e-2), "masked output mismatch"
    assert jnp.allclose(new_m, ref_new_m, atol=1e-2, rtol=1e-2), "masked state mismatch"

    # --- padded multi-step grid path (B not divisible by the batch tile) ---
    B2 = 5
    x2i = jax.random.normal(jax.random.PRNGKey(1), (B2, S, D_MODEL), jnp.float32)
    s2i = jax.random.normal(jax.random.PRNGKey(2), (B2, S, D_MODEL), jnp.float32)
    out_p, new_p = recurrent_block(x2i, s2i, params, mask=None, block_b=2)
    jax.block_until_ready(out_p)
    ref_out_p, ref_new_p = reference_block(x2i, s2i, params, mask=None)
    assert jnp.allclose(out_p, ref_out_p, atol=1e-2, rtol=1e-2), "padded output mismatch"
    assert jnp.allclose(new_p, ref_new_p, atol=1e-2, rtol=1e-2), "padded state mismatch"

    print("KERNEL_OK")
</pallas_src>

<mosaic_0001>
module attributes {stable_mosaic.version = 11 : i64} {
  func.func @kernel(%arg0: i32, %arg1: memref<2x8x32xf32, #tpu.memory_space<vmem>>, %arg2: memref<2x8x32xf32, #tpu.memory_space<vmem>>, %arg3: memref<32x32xf32, #tpu.memory_space<vmem>>, %arg4: memref<32x256xf32, #tpu.memory_space<vmem>>, %arg5: memref<32x32xf32, #tpu.memory_space<vmem>>, %arg6: memref<128x32xf32, #tpu.memory_space<vmem>>, %arg7: memref<4x256xf32, #tpu.memory_space<vmem>>, %arg8: memref<2x8x64xf32, #tpu.memory_space<vmem>>) attributes {dimension_semantics = [#tpu.dimension_semantics<parallel>], iteration_bounds = array<i64: 1>, scalar_prefetch = 0 : i64, scratch_operands = 0 : i64, tpu.core_type = #tpu.core_type<tc>, window_params = [{transform_indices = @transform_0, window_bounds = array<i64: 2, 8, 32>}, {transform_indices = @transform_1, window_bounds = array<i64: 2, 8, 32>}, {pipeline_mode = #tpu.pipeline_mode<synchronous>, transform_indices = @transform_2, window_bounds = array<i64: 32, 32>}, {pipeline_mode = #tpu.pipeline_mode<synchronous>, transform_indices = @transform_3, window_bounds = array<i64: 32, 256>}, {pipeline_mode = #tpu.pipeline_mode<synchronous>, transform_indices = @transform_4, window_bounds = array<i64: 32, 32>}, {pipeline_mode = #tpu.pipeline_mode<synchronous>, transform_indices = @transform_5, window_bounds = array<i64: 128, 32>}, {pipeline_mode = #tpu.pipeline_mode<synchronous>, transform_indices = @transform_6, window_bounds = array<i64: 4, 256>}, {transform_indices = @transform_7, window_bounds = array<i64: 2, 8, 64>}]} {
    %c0 = arith.constant 0 : index
    %c0_0 = arith.constant 0 : index
    %c0_1 = arith.constant 0 : index
    %0 = vector.load %arg1[%c0, %c0_0, %c0_1] : memref<2x8x32xf32, #tpu.memory_space<vmem>>, vector<2x8x32xf32>
    %1 = vector.shape_cast %0 : vector<2x8x32xf32> to vector<16x32xf32>
    %c0_2 = arith.constant 0 : index
    %c0_3 = arith.constant 0 : index
    %c0_4 = arith.constant 0 : index
    %2 = vector.load %arg2[%c0_2, %c0_3, %c0_4] : memref<2x8x32xf32, #tpu.memory_space<vmem>>, vector<2x8x32xf32>
    %3 = vector.shape_cast %2 : vector<2x8x32xf32> to vector<16x32xf32>
    %c0_5 = arith.constant 0 : index
    %c0_6 = arith.constant 0 : index
    %4 = vector.load %arg7[%c0_5, %c0_6] : memref<4x256xf32, #tpu.memory_space<vmem>>, vector<1x256xf32>
    %c1 = arith.constant 1 : index
    %c0_7 = arith.constant 0 : index
    %5 = vector.load %arg7[%c1, %c0_7] : memref<4x256xf32, #tpu.memory_space<vmem>>, vector<1x32xf32>
    %c2 = arith.constant 2 : index
    %c0_8 = arith.constant 0 : index
    %6 = vector.load %arg7[%c2, %c0_8] : memref<4x256xf32, #tpu.memory_space<vmem>>, vector<1x32xf32>
    %c3 = arith.constant 3 : index
    %c0_9 = arith.constant 0 : index
    %7 = vector.load %arg7[%c3, %c0_9] : memref<4x256xf32, #tpu.memory_space<vmem>>, vector<1x32xf32>
    %c0_10 = arith.constant 0 : index
    %c0_11 = arith.constant 0 : index
    %8 = vector.load %arg3[%c0_10, %c0_11] : memref<32x32xf32, #tpu.memory_space<vmem>>, vector<32x32xf32>
    %cst = arith.constant dense<0.000000e+00> : vector<16x32xf32>
    %9 = tpu.matmul %3, %8, %cst {dimension_numbers = #tpu.dot_dimension_numbers<[1], [0], [0], [1], [0, 0, 1, 1], [], []>} : vector<16x32xf32>, vector<32x32xf32>, vector<16x32xf32> -> vector<16x32xf32>
    %10 = arith.addf %1, %9 : vector<16x32xf32>
    %11 = vector.broadcast %5 : vector<1x32xf32> to vector<16x32xf32>
    %12 = arith.addf %10, %11 : vector<16x32xf32>
    %cst_12 = arith.constant dense<0.000000e+00> : vector<16xf32>
    %13 = vector.multi_reduction <add>, %12, %cst_12 [1] : vector<16x32xf32> to vector<16xf32>
    %14 = vector.shape_cast %13 : vector<16xf32> to vector<16x1xf32>
    %cst_13 = arith.constant 3.200000e+01 : f32
    %15 = vector.broadcast %cst_13 : f32 to vector<16x1xf32>
    %16 = arith.divf %14, %15 : vector<16x1xf32>
    %17 = vector.broadcast %16 : vector<16x1xf32> to vector<16x32xf32>
    %18 = arith.subf %12, %17 : vector<16x32xf32>
    %19 = arith.mulf %18, %18 : vector<16x32xf32>
    %cst_14 = arith.constant dense<0.000000e+00> : vector<16xf32>
    %20 = vector.multi_reduction <add>, %19, %cst_14 [1] : vector<16x32xf32> to vector<16xf32>
    %21 = vector.shape_cast %20 : vector<16xf32> to vector<16x1xf32>
    %cst_15 = arith.constant 3.200000e+01 : f32
    %22 = vector.broadcast %cst_15 : f32 to vector<16x1xf32>
    %23 = arith.divf %21, %22 : vector<16x1xf32>
    %cst_16 = arith.constant 9.99999974E-6 : f32
    %24 = vector.broadcast %cst_16 : f32 to vector<16x1xf32>
    %25 = arith.addf %23, %24 : vector<16x1xf32>
    %26 = math.rsqrt %25 : vector<16x1xf32>
    %27 = vector.broadcast %26 : vector<16x1xf32> to vector<16x32xf32>
    %28 = arith.mulf %18, %27 : vector<16x32xf32>
    %c0_17 = arith.constant 0 : index
    %c0_18 = arith.constant 0 : index
    %29 = vector.load %arg4[%c0_17, %c0_18] : memref<32x256xf32, #tpu.memory_space<vmem>>, vector<32x256xf32>
    %cst_19 = arith.constant dense<0.000000e+00> : vector<16x256xf32>
    %30 = tpu.matmul %28, %29, %cst_19 {dimension_numbers = #tpu.dot_dimension_numbers<[1], [0], [0], [1], [0, 0, 1, 1], [], []>} : vector<16x32xf32>, vector<32x256xf32>, vector<16x256xf32> -> vector<16x256xf32>
    %31 = vector.broadcast %4 : vector<1x256xf32> to vector<16x256xf32>
    %32 = arith.addf %30, %31 : vector<16x256xf32>
    %33 = vector.extract_strided_slice %32 {offsets = [0, 0], sizes = [16, 128], strides = [1, 1]} : vector<16x256xf32> to vector<16x128xf32>
    %34 = vector.extract_strided_slice %32 {offsets = [0, 128], sizes = [16, 32], strides = [1, 1]} : vector<16x256xf32> to vector<16x32xf32>
    %35 = vector.shape_cast %34 : vector<16x32xf32> to vector<2x8x32xf32>
    %36 = vector.extract_strided_slice %32 {offsets = [0, 160], sizes = [16, 32], strides = [1, 1]} : vector<16x256xf32> to vector<16x32xf32>
    %37 = vector.shape_cast %36 : vector<16x32xf32> to vector<2x8x32xf32>
    %38 = vector.extract_strided_slice %32 {offsets = [0, 192], sizes = [16, 32], strides = [1, 1]} : vector<16x256xf32> to vector<16x32xf32>
    %39 = vector.shape_cast %38 : vector<16x32xf32> to vector<2x8x32xf32>
    %40 = vector.extract_strided_slice %35 {offsets = [0, 0, 0], sizes = [2, 8, 8], strides = [1, 1, 1]} : vector<2x8x32xf32> to vector<2x8x8xf32>
    %41 = vector.extract_strided_slice %37 {offsets = [0, 0, 0], sizes = [2, 8, 8], strides = [1, 1, 1]} : vector<2x8x32xf32> to vector<2x8x8xf32>
    "tpu.trace_start"() <{level = 10 : i32, message = "bqd,bkd->bqk"}> : () -> ()
    %cst_20 = arith.constant dense<0.000000e+00> : vector<2x8x8xf32>
    %42 = tpu.matmul %40, %41, %cst_20 {dimension_numbers = #tpu.dot_dimension_numbers<[2], [2], [1], [1], [0, 0, 0, 1, 1, 1], [0], [0]>} : vector<2x8x8xf32>, vector<2x8x8xf32>, vector<2x8x8xf32> -> vector<2x8x8xf32>
    "tpu.trace_stop"() : () -> ()
    %cst_21 = arith.constant dense<0xFF800000> : vector<2x8xf32>
    %43 = vector.multi_reduction <maximumf>, %42, %cst_21 [2] : vector<2x8x8xf32> to vector<2x8xf32>
    %44 = vector.shape_cast %43 : vector<2x8xf32> to vector<2x8x1xf32>
    %45 = vector.broadcast %44 : vector<2x8x1xf32> to vector<2x8x8xf32>
    %46 = arith.subf %42, %45 : vector<2x8x8xf32>
    %47 = math.exp %46 : vector<2x8x8xf32>
    %cst_22 = arith.constant dense<0.000000e+00> : vector<2x8xf32>
    %48 = vector.multi_reduction <add>, %47, %cst_22 [2] : vector<2x8x8xf32> to vector<2x8xf32>
    %49 = vector.shape_cast %48 : vector<2x8xf32> to vector<2x8x1xf32>
    %50 = vector.broadcast %49 : vector<2x8x1xf32> to vector<2x8x8xf32>
    %51 = arith.divf %47, %50 : vector<2x8x8xf32>
    %52 = vector.extract_strided_slice %39 {offsets = [0, 0, 0], sizes = [2, 8, 8], strides = [1, 1, 1]} : vector<2x8x32xf32> to vector<2x8x8xf32>
    "tpu.trace_start"() <{level = 10 : i32, message = "bqk,bkd->bqd"}> : () -> ()
    %cst_23 = arith.constant dense<0.000000e+00> : vector<2x8x8xf32>
    %53 = tpu.matmul %51, %52, %cst_23 {dimension_numbers = #tpu.dot_dimension_numbers<[2], [1], [1], [2], [0, 0, 0, 1, 1, 2], [0], [0]>} : vector<2x8x8xf32>, vector<2x8x8xf32>, vector<2x8x8xf32> -> vector<2x8x8xf32>
    "tpu.trace_stop"() : () -> ()
    %54 = vector.extract_strided_slice %35 {offsets = [0, 0, 8], sizes = [2, 8, 8], strides = [1, 1, 1]} : vector<2x8x32xf32> to vector<2x8x8xf32>
    %55 = vector.extract_strided_slice %37 {offsets = [0, 0, 8], sizes = [2, 8, 8], strides = [1, 1, 1]} : vector<2x8x32xf32> to vector<2x8x8xf32>
    "tpu.trace_start"() <{level = 10 : i32, message = "bqd,bkd->bqk"}> : () -> ()
    %cst_24 = arith.constant dense<0.000000e+00> : vector<2x8x8xf32>
    %56 = tpu.matmul %54, %55, %cst_24 {dimension_numbers = #tpu.dot_dimension_numbers<[2], [2], [1], [1], [0, 0, 0, 1, 1, 1], [0], [0]>} : vector<2x8x8xf32>, vector<2x8x8xf32>, vector<2x8x8xf32> -> vector<2x8x8xf32>
    "tpu.trace_stop"() : () -> ()
    %cst_25 = arith.constant dense<0xFF800000> : vector<2x8xf32>
    %57 = vector.multi_reduction <maximumf>, %56, %cst_25 [2] : vector<2x8x8xf32> to vector<2x8xf32>
    %58 = vector.shape_cast %57 : vector<2x8xf32> to vector<2x8x1xf32>
    %59 = vector.broadcast %58 : vector<2x8x1xf32> to vector<2x8x8xf32>
    %60 = arith.subf %56, %59 : vector<2x8x8xf32>
    %61 = math.exp %60 : vector<2x8x8xf32>
    %cst_26 = arith.constant dense<0.000000e+00> : vector<2x8xf32>
    %62 = vector.multi_reduction <add>, %61, %cst_26 [2] : vector<2x8x8xf32> to vector<2x8xf32>
    %63 = vector.shape_cast %62 : vector<2x8xf32> to vector<2x8x1xf32>
    %64 = vector.broadcast %63 : vector<2x8x1xf32> to vector<2x8x8xf32>
    %65 = arith.divf %61, %64 : vector<2x8x8xf32>
    %66 = vector.extract_strided_slice %39 {offsets = [0, 0, 8], sizes = [2, 8, 8], strides = [1, 1, 1]} : vector<2x8x32xf32> to vector<2x8x8xf32>
    "tpu.trace_start"() <{level = 10 : i32, message = "bqk,bkd->bqd"}> : () -> ()
    %cst_27 = arith.constant dense<0.000000e+00> : vector<2x8x8xf32>
    %67 = tpu.matmul %65, %66, %cst_27 {dimension_numbers = #tpu.dot_dimension_numbers<[2], [1], [1], [2], [0, 0, 0, 1, 1, 2], [0], [0]>} : vector<2x8x8xf32>, vector<2x8x8xf32>, vector<2x8x8xf32> -> vector<2x8x8xf32>
    "tpu.trace_stop"() : () -> ()
    %68 = vector.extract_strided_slice %35 {offsets = [0, 0, 16], sizes = [2, 8, 8], strides = [1, 1, 1]} : vector<2x8x32xf32> to vector<2x8x8xf32>
    %69 = vector.extract_strided_slice %37 {offsets = [0, 0, 16], sizes = [2, 8, 8], strides = [1, 1, 1]} : vector<2x8x32xf32> to vector<2x8x8xf32>
    "tpu.trace_start"() <{level = 10 : i32, message = "bqd,bkd->bqk"}> : () -> ()
    %cst_28 = arith.constant dense<0.000000e+00> : vector<2x8x8xf32>
    %70 = tpu.matmul %68, %69, %cst_28 {dimension_numbers = #tpu.dot_dimension_numbers<[2], [2], [1], [1], [0, 0, 0, 1, 1, 1], [0], [0]>} : vector<2x8x8xf32>, vector<2x8x8xf32>, vector<2x8x8xf32> -> vector<2x8x8xf32>
    "tpu.trace_stop"() : () -> ()
    %cst_29 = arith.constant dense<0xFF800000> : vector<2x8xf32>
    %71 = vector.multi_reduction <maximumf>, %70, %cst_29 [2] : vector<2x8x8xf32> to vector<2x8xf32>
    %72 = vector.shape_cast %71 : vector<2x8xf32> to vector<2x8x1xf32>
    %73 = vector.broadcast %72 : vector<2x8x1xf32> to vector<2x8x8xf32>
    %74 = arith.subf %70, %73 : vector<2x8x8xf32>
    %75 = math.exp %74 : vector<2x8x8xf32>
    %cst_30 = arith.constant dense<0.000000e+00> : vector<2x8xf32>
    %76 = vector.multi_reduction <add>, %75, %cst_30 [2] : vector<2x8x8xf32> to vector<2x8xf32>
    %77 = vector.shape_cast %76 : vector<2x8xf32> to vector<2x8x1xf32>
    %78 = vector.broadcast %77 : vector<2x8x1xf32> to vector<2x8x8xf32>
    %79 = arith.divf %75, %78 : vector<2x8x8xf32>
    %80 = vector.extract_strided_slice %39 {offsets = [0, 0, 16], sizes = [2, 8, 8], strides = [1, 1, 1]} : vector<2x8x32xf32> to vector<2x8x8xf32>
    "tpu.trace_start"() <{level = 10 : i32, message = "bqk,bkd->bqd"}> : () -> ()
    %cst_31 = arith.constant dense<0.000000e+00> : vector<2x8x8xf32>
    %81 = tpu.matmul %79, %80, %cst_31 {dimension_numbers = #tpu.dot_dimension_numbers<[2], [1], [1], [2], [0, 0, 0, 1, 1, 2], [0], [0]>} : vector<2x8x8xf32>, vector<2x8x8xf32>, vector<2x8x8xf32> -> vector<2x8x8xf32>
    "tpu.trace_stop"() : () -> ()
    %82 = vector.extract_strided_slice %35 {offsets = [0, 0, 24], sizes = [2, 8, 8], strides = [1, 1, 1]} : vector<2x8x32xf32> to vector<2x8x8xf32>
    %83 = vector.extract_strided_slice %37 {offsets = [0, 0, 24], sizes = [2, 8, 8], strides = [1, 1, 1]} : vector<2x8x32xf32> to vector<2x8x8xf32>
    "tpu.trace_start"() <{level = 10 : i32, message = "bqd,bkd->bqk"}> : () -> ()
    %cst_32 = arith.constant dense<0.000000e+00> : vector<2x8x8xf32>
    %84 = tpu.matmul %82, %83, %cst_32 {dimension_numbers = #tpu.dot_dimension_numbers<[2], [2], [1], [1], [0, 0, 0, 1, 1, 1], [0], [0]>} : vector<2x8x8xf32>, vector<2x8x8xf32>, vector<2x8x8xf32> -> vector<2x8x8xf32>
    "tpu.trace_stop"() : () -> ()
    %cst_33 = arith.constant dense<0xFF800000> : vector<2x8xf32>
    %85 = vector.multi_reduction <maximumf>, %84, %cst_33 [2] : vector<2x8x8xf32> to vector<2x8xf32>
    %86 = vector.shape_cast %85 : vector<2x8xf32> to vector<2x8x1xf32>
    %87 = vector.broadcast %86 : vector<2x8x1xf32> to vector<2x8x8xf32>
    %88 = arith.subf %84, %87 : vector<2x8x8xf32>
    %89 = math.exp %88 : vector<2x8x8xf32>
    %cst_34 = arith.constant dense<0.000000e+00> : vector<2x8xf32>
    %90 = vector.multi_reduction <add>, %89, %cst_34 [2] : vector<2x8x8xf32> to vector<2x8xf32>
    %91 = vector.shape_cast %90 : vector<2x8xf32> to vector<2x8x1xf32>
    %92 = vector.broadcast %91 : vector<2x8x1xf32> to vector<2x8x8xf32>
    %93 = arith.divf %89, %92 : vector<2x8x8xf32>
    %94 = vector.extract_strided_slice %39 {offsets = [0, 0, 24], sizes = [2, 8, 8], strides = [1, 1, 1]} : vector<2x8x32xf32> to vector<2x8x8xf32>
    "tpu.trace_start"() <{level = 10 : i32, message = "bqk,bkd->bqd"}> : () -> ()
    %cst_35 = arith.constant dense<0.000000e+00> : vector<2x8x8xf32>
    %95 = tpu.matmul %93, %94, %cst_35 {dimension_numbers = #tpu.dot_dimension_numbers<[2], [1], [1], [2], [0, 0, 0, 1, 1, 2], [0], [0]>} : vector<2x8x8xf32>, vector<2x8x8xf32>, vector<2x8x8xf32> -> vector<2x8x8xf32>
    "tpu.trace_stop"() : () -> ()
    %96 = tpu.concatenate %53, %67, %81, %95 in 2 : vector<2x8x8xf32>, vector<2x8x8xf32>, vector<2x8x8xf32>, vector<2x8x8xf32> -> vector<2x8x32xf32>
    %97 = vector.shape_cast %96 : vector<2x8x32xf32> to vector<16x32xf32>
    %c0_36 = arith.constant 0 : index
    %c0_37 = arith.constant 0 : index
    %98 = vector.load %arg5[%c0_36, %c0_37] : memref<32x32xf32, #tpu.memory_space<vmem>>, vector<32x32xf32>
    %cst_38 = arith.constant dense<0.000000e+00> : vector<16x32xf32>
    %99 = tpu.matmul %97, %98, %cst_38 {dimension_numbers = #tpu.dot_dimension_numbers<[1], [0], [0], [1], [0, 0, 1, 1], [], []>} : vector<16x32xf32>, vector<32x32xf32>, vector<16x32xf32> -> vector<16x32xf32>
    %100 = vector.broadcast %6 : vector<1x32xf32> to vector<16x32xf32>
    %101 = arith.addf %99, %100 : vector<16x32xf32>
    %cst_39 = arith.constant 5.000000e-01 : f32
    %102 = vector.broadcast %cst_39 : f32 to vector<16x128xf32>
    %103 = arith.mulf %102, %33 : vector<16x128xf32>
    %cst_40 = arith.constant 4.471500e-02 : f32
    %104 = vector.broadcast %cst_40 : f32 to vector<16x128xf32>
    %105 = arith.mulf %104, %33 : vector<16x128xf32>
    %106 = arith.mulf %105, %33 : vector<16x128xf32>
    %107 = arith.mulf %106, %33 : vector<16x128xf32>
    %108 = arith.addf %33, %107 : vector<16x128xf32>
    %cst_41 = arith.constant 0.797884583 : f32
    %109 = vector.broadcast %cst_41 : f32 to vector<16x128xf32>
    %110 = arith.mulf %109, %108 : vector<16x128xf32>
    %111 = math.tanh %110 : vector<16x128xf32>
    %cst_42 = arith.constant 1.000000e+00 : f32
    %112 = vector.broadcast %cst_42 : f32 to vector<16x128xf32>
    %113 = arith.addf %112, %111 : vector<16x128xf32>
    %114 = arith.mulf %103, %113 : vector<16x128xf32>
    %c0_43 = arith.constant 0 : index
    %c0_44 = arith.constant 0 : index
    %115 = vector.load %arg6[%c0_43, %c0_44] : memref<128x32xf32, #tpu.memory_space<vmem>>, vector<128x32xf32>
    %cst_45 = arith.constant dense<0.000000e+00> : vector<16x32xf32>
    %116 = tpu.matmul %114, %115, %cst_45 {dimension_numbers = #tpu.dot_dimension_numbers<[1], [0], [0], [1], [0, 0, 1, 1], [], []>} : vector<16x128xf32>, vector<128x32xf32>, vector<16x32xf32> -> vector<16x32xf32>
    %117 = vector.broadcast %7 : vector<1x32xf32> to vector<16x32xf32>
    %118 = arith.addf %116, %117 : vector<16x32xf32>
    %119 = arith.addf %12, %101 : vector<16x32xf32>
    %120 = arith.addf %119, %118 : vector<16x32xf32>
    %121 = tpu.concatenate %120, %12 in 1 : vector<16x32xf32>, vector<16x32xf32> -> vector<16x64xf32>
    %122 = vector.shape_cast %121 : vector<16x64xf32> to vector<2x8x64xf32>
    %c0_46 = arith.constant 0 : index
    %c0_47 = arith.constant 0 : index
    %c0_48 = arith.constant 0 : index
    %123 = vector.load %arg8[%c0_46, %c0_47, %c0_48] : memref<2x8x64xf32, #tpu.memory_space<vmem>>, vector<2x8x64xf32>
    tpu.vector_store %arg8[%c0_46, %c0_47, %c0_48], %122 {strides = array<i32>} : memref<2x8x64xf32, #tpu.memory_space<vmem>>, vector<2x8x64xf32>,
    return
  }
  func.func @transform_0(%arg0: i32) -> (i32, i32, i32) {
    %c0_i32 = arith.constant 0 : i32
    %c0_i32_0 = arith.constant 0 : i32
    %c0_i32_1 = arith.constant 0 : i32
    return %arg0, %c0_i32, %c0_i32_0 : i32, i32, i32
  }
  func.func @transform_1(%arg0: i32) -> (i32, i32, i32) {
    %c0_i32 = arith.constant 0 : i32
    %c0_i32_0 = arith.constant 0 : i32
    %c0_i32_1 = arith.constant 0 : i32
    return %arg0, %c0_i32, %c0_i32_0 : i32, i32, i32
  }
  func.func @transform_2(%arg0: i32) -> (i32, i32) {
    %c0_i32 = arith.constant 0 : i32
    %c0_i32_0 = arith.constant 0 : i32
    %c0_i32_1 = arith.constant 0 : i32
    return %c0_i32, %c0_i32_0 : i32, i32
  }
  func.func @transform_3(%arg0: i32) -> (i32, i32) {
    %c0_i32 = arith.constant 0 : i32
    %c0_i32_0 = arith.constant 0 : i32
    %c0_i32_1 = arith.constant 0 : i32
    return %c0_i32, %c0_i32_0 : i32, i32
  }
  func.func @transform_4(%arg0: i32) -> (i32, i32) {
    %c0_i32 = arith.constant 0 : i32
    %c0_i32_0 = arith.constant 0 : i32
    %c0_i32_1 = arith.constant 0 : i32
    return %c0_i32, %c0_i32_0 : i32, i32
  }
  func.func @transform_5(%arg0: i32) -> (i32, i32) {
    %c0_i32 = arith.constant 0 : i32
    %c0_i32_0 = arith.constant 0 : i32
    %c0_i32_1 = arith.constant 0 : i32
    return %c0_i32, %c0_i32_0 : i32, i32
  }
  func.func @transform_6(%arg0: i32) -> (i32, i32) {
    %c0_i32 = arith.constant 0 : i32
    %c0_i32_0 = arith.constant 0 : i32
    %c0_i32_1 = arith.constant 0 : i32
    return %c0_i32, %c0_i32_0 : i32, i32
  }
  func.func @transform_7(%arg0: i32) -> (i32, i32, i32) {
    %c0_i32 = arith.constant 0 : i32
    %c0_i32_0 = arith.constant 0 : i32
    %c0_i32_1 = arith.constant 0 : i32
    return %arg0, %c0_i32, %c0_i32_0 : i32, i32, i32
  }
}

</mosaic_0001>

<llo_original>
// kernel: tpu_custom_call.1
$region0: #{tpu_custom_call.1}
  #allocation0 [shape = 'u32[]', space=smem, size = 0x4, offset = 0x4, fixed_abs, tag = 'smem constant byte address 0x4 - core index']
  #allocation1 [shape = 'u32[144,128]{1,0:T(1,128)}', space=vmem, size = 0x12000, scoped, tag = 'internal scratch']
  %s0 = inlined_call_operand.vmem [shape: f32[2,8,32], index: 0, kind: input, shape index: {}]
  %s1 = inlined_call_operand.vmem [shape: f32[2,8,32], index: 1, kind: input, shape index: {}]
  %s2 = inlined_call_operand.vmem [shape: f32[32,32], index: 2, kind: input, shape index: {}]
  %s3 = inlined_call_operand.vmem [shape: f32[32,256], index: 3, kind: input, shape index: {}]
  %s4 = inlined_call_operand.vmem [shape: f32[32,32], index: 4, kind: input, shape index: {}]
  %s5 = inlined_call_operand.vmem [shape: f32[128,32], index: 5, kind: input, shape index: {}]
  %s6 = inlined_call_operand.vmem [shape: f32[4,256], index: 6, kind: input, shape index: {}]
  %s7 = inlined_call_operand.hbm [shape: f32[2,8,64], index: 7, kind: output, shape index: {}]
  %s8 = sld [smem:[#allocation0]]
  $region38: #{tpu_custom_call.1} parent=0
    _
  %s10 = ssub.s32 1, %s8
  %s11 = scalar_select 0, %s10, %s8
  $region1: #{tpu_custom_call.1} parent=0
    #allocation2 [shape = 'u8[8192]{0}', space=vmem, size = 0x2000, scoped, tag = 'output window, operand 0, single buffered']
    #allocation3 [shape = 's32[1]{0}', space=sflag, size = 0x4, scoped, tag = 'scoped memory for tpu_custom_call.1']
    %12 = vsyncpa [#allocation3], 0
    // Predicated region
    $region2: #{tpu_custom_call.1} parent=1 // pred_check
      _
    $region3: #{tpu_custom_call.1} parent=1 // pred_check_branch
      %14 = sbr.rel (0) target = $region5
    $region4: #{tpu_custom_call.1} parent=1 // pred_region
      _
    $region5: #{tpu_custom_call.1} parent=1 // pred_fallthru
      _
    // Predicated region
    $region6: #{tpu_custom_call.1} parent=1 // pred_check
      _
    $region7: #{tpu_custom_call.1} parent=1 // pred_check_branch
      %16 = sbr.rel (0) target = $region9
    $region8: #{tpu_custom_call.1} parent=1 // pred_region
      _
    $region9: #{tpu_custom_call.1} parent=1 // pred_fallthru
      _
    // Predicated region
    $region10: #{tpu_custom_call.1} parent=1 // pred_check
      _
    $region11: #{tpu_custom_call.1} parent=1 // pred_check_branch
      %18 = sbr.rel (0) target = $region13
    $region12: #{tpu_custom_call.1} parent=1 // pred_region
      _
    $region13: #{tpu_custom_call.1} parent=1 // pred_fallthru
      _
    // Predicated region
    $region14: #{tpu_custom_call.1} parent=1 // pred_check
      _
    $region15: #{tpu_custom_call.1} parent=1 // pred_check_branch
      %20 = sbr.rel (0) target = $region17
    $region16: #{tpu_custom_call.1} parent=1 // pred_region
      _
    $region17: #{tpu_custom_call.1} parent=1 // pred_fallthru
      _
    // Predicated region
    $region18: #{tpu_custom_call.1} parent=1 // pred_check
      _
    $region19: #{tpu_custom_call.1} parent=1 // pred_check_branch
      %22 = sbr.rel (0) target = $region21
    $region20: #{tpu_custom_call.1} parent=1 // pred_region
      _
    $region21: #{tpu_custom_call.1} parent=1 // pred_fallthru
      _
    // Predicated region
    $region22: #{tpu_custom_call.1} parent=1 // pred_check
      _
    $region23: #{tpu_custom_call.1} parent=1 // pred_check_branch
      %24 = sbr.rel (0) target = $region25
    $region24: #{tpu_custom_call.1} parent=1 // pred_region
      _
    $region25: #{tpu_custom_call.1} parent=1 // pred_fallthru
      _
    // Predicated region
    $region26: #{tpu_custom_call.1} parent=1 // pred_check
      _
    $region27: #{tpu_custom_call.1} parent=1 // pred_check_branch
      %26 = sbr.rel (0) target = $region29
    $region28: #{tpu_custom_call.1} parent=1 // pred_region
      _
    $region29: #{tpu_custom_call.1} parent=1 // pred_fallthru
      _
    %v27 = vld [vmem:[%s0] sm:$0xff]
    %v28 = vld [vmem:[%s0 + $0x8] sm:$0xff]
    %v29 = vld [vmem:[%s1] sm:$0xff]
    %v30 = vld [vmem:[%s1 + $0x8] sm:$0xff]
    %v31 = vld [vmem:[%s6] ss:$4 sm:$0x3]
    %v32 = vld [vmem:[%s6 + $0x1] sm:$0x1]
    %v33 = vld [vmem:[%s6 + $0x2] sm:$0x1]
    %v34 = vld [vmem:[%s6 + $0x3] sm:$0x1]
    %v35 = vld [vmem:[%s2] sm:$0xff]
    %v36 = vld [vmem:[%s2 + $0x8] sm:$0xff]
    %v37 = vld [vmem:[%s2 + $0x10] sm:$0xff]
    %v38 = vld [vmem:[%s2 + $0x18] sm:$0xff]
    %vm39 = vcmask 261120
    %v41 = vsel %vm39, %v29, 0
    %v44 = vsel %vm39, %v30, 0
    %46 = vmatprep.subr.mxu0 0.0
    %47 = vmatpush1.msra.mxu0 0.0
    %48 = vmatprep.subr.mxu0 0.0
    %49 = vmatpush1.msra.mxu0 0.0
    %50 = vmatprep.subr.mxu0 0.0
    %51 = vmatpush1.msra.mxu0 0.0
    %52 = vmatprep.subr.mxu0 0.0
    %53 = vmatpush1.msra.mxu0 0.0
    %54 = vmatprep.subr.mxu0 0.0
    %55 = vmatpush1.msra.mxu0 0.0
    %56 = vmatprep.subr.mxu0 0.0
    %57 = vmatpush1.msra.mxu0 0.0
    %58 = vmatprep.subr.mxu0 0.0
    %59 = vmatpush1.msra.mxu0 0.0
    %60 = vmatprep.subr.mxu0 0.0
    %61 = vmatpush1.msra.mxu0 0.0
    %62 = vmatprep.subr.mxu0 0.0
    %63 = vmatpush1.msra.mxu0 0.0
    %64 = vmatprep.subr.mxu0 0.0
    %65 = vmatpush1.msra.mxu0 0.0
    %66 = vmatprep.subr.mxu0 0.0
    %67 = vmatpush1.msra.mxu0 0.0
    %68 = vmatprep.subr.mxu0 0.0
    %69 = vmatpush1.msra.mxu0 0.0
    %70 = vmatprep.subr.mxu0 0.0
    %71 = vmatpush1.msra.mxu0 %v38
    %72 = vmatprep.subr.mxu0 0.0
    %73 = vmatpush1.msra.mxu0 %v37
    %74 = vmatprep.subr.mxu0 0.0
    %75 = vmatpush1.msra.mxu0 %v36
    %76 = vmatprep.subr.mxu0 0.0
    %77 = vmatpush1.msra.mxu0 %v35
    %78 = vmatprep.subr.mxu0 0.0
    %79 = vmatpush2.msra.mxu0 0.0
    %80 = vmatprep.subr.mxu0 0.0
    %81 = vmatpush2.msra.mxu0 0.0
    %82 = vmatprep.subr.mxu0 0.0
    %83 = vmatpush2.msra.mxu0 0.0
    %84 = vmatprep.subr.mxu0 0.0
    %85 = vmatpush2.msra.mxu0 0.0
    %86 = vmatprep.subr.mxu0 0.0
    %87 = vmatpush2.msra.mxu0 0.0
    %88 = vmatprep.subr.mxu0 0.0
    %89 = vmatpush2.msra.mxu0 0.0
    %90 = vmatprep.subr.mxu0 0.0
    %91 = vmatpush2.msra.mxu0 0.0
    %92 = vmatprep.subr.mxu0 0.0
    %93 = vmatpush2.msra.mxu0 0.0
    %94 = vmatprep.subr.mxu0 0.0
    %95 = vmatpush2.msra.mxu0 0.0
    %96 = vmatprep.subr.mxu0 0.0
    %97 = vmatpush2.msra.mxu0 0.0
    %98 = vmatprep.subr.mxu0 0.0
    %99 = vmatpush2.msra.mxu0 0.0
    %100 = vmatprep.subr.mxu0 0.0
    %101 = vmatpush2.msra.mxu0 0.0
    %102 = vmatprep.subr.mxu0 0.0
    %103 = vmatpush2.msra.mxu0 0.0
    %104 = vmatprep.subr.mxu0 0.0
    %105 = vmatpush2.msra.mxu0 0.0
    %106 = vmatprep.subr.mxu0 0.0
    %107 = vmatpush2.msra.mxu0 0.0
    %108 = vmatprep.subr.mxu0 0.0
    %109 = vmatpush2.msra.mxu0 0.0
    %110 = vmatprep.mubr.f32.mxu0 0.0
    %111 = vmatmul.mubr.f32.gmra.mxu0 %v41
    %v112 = vpop.f32.mrf.mxu0
    %v113 = vadd.f32 0.0, %v112
    %v114 = vpop.f32.mrf.mxu0
    %115 = vmatprep.mubr.f32.mxu0 0.0
    %116 = vmatmul.mubr.f32.gmra.mxu0 %v44
    %v117 = vpop.f32.mrf.mxu0
    %v118 = vadd.f32 0.0, %v117
    %v119 = vpop.f32.mrf.mxu0
    %120 = vdwg.mxu0
    %v121 = vadd.f32 %v27, %v113
    %v122 = vadd.f32 %v28, %v118
    %v123 = vlaneseq
    %v124 = vshrl.u32 %v123, 7
    %v125 = vsub.s32 0, %v124
    %v126 = vrot.slane %v32, %v125
    %v127 = vadd.f32 %v121, %v126
    %v128 = vadd.f32 %v122, %v126
    %v129 = vsel %vm39, %v127, 0.0
    %130 = vadd.xlane.f32.xlu0 %v129
    %v131 = vpop.xlane.xlu0 %130
    %v132 = vsel %vm39, %v128, 0.0
    %133 = vadd.xlane.f32.xlu0 %v132
    %v134 = vpop.xlane.xlu0 %133
    %v135 = vrcp.pop 32.0
    %v136 = vmul.f32 %v131, %v135
    %v137 = vmul.f32 %v134, %v135
    %v138 = vsub.f32 %v127, %v136
    %v139 = vsub.f32 %v128, %v137
    %v140 = vmul.f32 %v138, %v138
    %v141 = vmul.f32 %v139, %v139
    %v142 = vsel %vm39, %v140, 0.0
    %143 = vadd.xlane.f32.xlu0 %v142
    %v144 = vpop.xlane.xlu0 %143
    %v145 = vsel %vm39, %v141, 0.0
    %146 = vadd.xlane.f32.xlu0 %v145
    %v147 = vpop.xlane.xlu0 %146
    %v148 = vmul.f32 %v144, %v135
    %v149 = vmul.f32 %v147, %v135
    %v150 = vadd.f32 %v148, 1e-05
    %v151 = vadd.f32 %v149, 1e-05
    %v152 = vrsqrt.pop %v150
    %v153 = vrsqrt.pop %v151
    %v154 = vmul.f32 %v138, %v152
    %v155 = vmul.f32 %v139, %v153
    %v156 = vld [vmem:[%s3] sm:$0xff]
    %v157 = vld [vmem:[%s3 + $0x8] sm:$0xff]
    %v158 = vld [vmem:[%s3 + $0x10] sm:$0xff]
    %v159 = vld [vmem:[%s3 + $0x18] sm:$0xff]
    %v160 = vld [vmem:[%s3 + $0x20] sm:$0xff]
    %v161 = vld [vmem:[%s3 + $0x28] sm:$0xff]
    %v162 = vld [vmem:[%s3 + $0x30] sm:$0xff]
    %v163 = vld [vmem:[%s3 + $0x38] sm:$0xff]
    %v165 = vlaneseq
    %v166 = vshrl.u32 %v165, 7
    %v167 = vsub.s32 0, %v166
    %v168 = vrot.slane %v31, %v167
    %v169 = vlaneseq
    %v170 = vshrl.u32 %v169, 7
    %v171 = vsub.s32 1, %v170
    %v172 = vrot.slane %v31, %v171
    %v176 = vsel %vm39, %v154, 0
    %v179 = vsel %vm39, %v155, 0
    %181 = vmatprep.subr.mxu0 0.0
    %182 = vmatpush1.msra.mxu0 0.0
    %183 = vmatprep.subr.mxu0 0.0
    %184 = vmatpush1.msra.mxu0 0.0
    %185 = vmatprep.subr.mxu0 0.0
    %186 = vmatpush1.msra.mxu0 0.0
    %187 = vmatprep.subr.mxu0 0.0
    %188 = vmatpush1.msra.mxu0 0.0
    %189 = vmatprep.subr.mxu0 0.0
    %190 = vmatpush1.msra.mxu0 0.0
    %191 = vmatprep.subr.mxu0 0.0
    %192 = vmatpush1.msra.mxu0 0.0
    %193 = vmatprep.subr.mxu0 0.0
    %194 = vmatpush1.msra.mxu0 0.0
    %195 = vmatprep.subr.mxu0 0.0
    %196 = vmatpush1.msra.mxu0 0.0
    %197 = vmatprep.subr.mxu0 0.0
    %198 = vmatpush1.msra.mxu0 0.0
    %199 = vmatprep.subr.mxu0 0.0
    %200 = vmatpush1.msra.mxu0 0.0
    %201 = vmatprep.subr.mxu0 0.0
    %202 = vmatpush1.msra.mxu0 0.0
    %203 = vmatprep.subr.mxu0 0.0
    %204 = vmatpush1.msra.mxu0 0.0
    %205 = vmatprep.subr.mxu0 %v163
    %206 = vmatpush1.msra.mxu0 %v162
    %207 = vmatprep.subr.mxu0 %v161
    %208 = vmatpush1.msra.mxu0 %v160
    %209 = vmatprep.subr.mxu0 %v159
    %210 = vmatpush1.msra.mxu0 %v158
    %211 = vmatprep.subr.mxu0 %v157
    %212 = vmatpush1.msra.mxu0 %v156
    %213 = vmatprep.subr.mxu0 0.0
    %214 = vmatpush2.msra.mxu0 0.0
    %215 = vmatprep.subr.mxu0 0.0
    %216 = vmatpush2.msra.mxu0 0.0
    %217 = vmatprep.subr.mxu0 0.0
    %218 = vmatpush2.msra.mxu0 0.0
    %219 = vmatprep.subr.mxu0 0.0
    %220 = vmatpush2.msra.mxu0 0.0
    %221 = vmatprep.subr.mxu0 0.0
    %222 = vmatpush2.msra.mxu0 0.0
    %223 = vmatprep.subr.mxu0 0.0
    %224 = vmatpush2.msra.mxu0 0.0
    %225 = vmatprep.subr.mxu0 0.0
    %226 = vmatpush2.msra.mxu0 0.0
    %227 = vmatprep.subr.mxu0 0.0
    %228 = vmatpush2.msra.mxu0 0.0
    %229 = vmatprep.subr.mxu0 0.0
    %230 = vmatpush2.msra.mxu0 0.0
    %231 = vmatprep.subr.mxu0 0.0
    %232 = vmatpush2.msra.mxu0 0.0
    %233 = vmatprep.subr.mxu0 0.0
    %234 = vmatpush2.msra.mxu0 0.0
    %235 = vmatprep.subr.mxu0 0.0
    %236 = vmatpush2.msra.mxu0 0.0
    %237 = vmatprep.subr.mxu0 0.0
    %238 = vmatpush2.msra.mxu0 0.0
    %239 = vmatprep.subr.mxu0 0.0
    %240 = vmatpush2.msra.mxu0 0.0
    %241 = vmatprep.subr.mxu0 0.0
    %242 = vmatpush2.msra.mxu0 0.0
    %243 = vmatprep.subr.mxu0 0.0
    %244 = vmatpush2.msra.mxu0 0.0
    %245 = vmatprep.mubr.f32.mxu0 0.0
    %246 = vmatmul.mubr.f32.gmra.mxu0 %v176
    %v247 = vpop.f32.mrf.mxu0
    %v248 = vadd.f32 %v168, %v247
    %v249 = vpop.f32.mrf.mxu0
    %v250 = vadd.f32 %v172, %v249
    %251 = vmatprep.mubr.f32.mxu0 0.0
    %252 = vmatmul.mubr.f32.gmra.mxu0 %v179
    %v253 = vpop.f32.mrf.mxu0
    %v254 = vadd.f32 %v168, %v253
    %v255 = vpop.f32.mrf.mxu0
    %v256 = vadd.f32 %v172, %v255
    %257 = vdwg.mxu0
    %259 = vrot.lane.b32.xlu0 %v250, 96
    %v260 = vpop.permute.xlu0 %259
    %vm261 = vcmask 64512
    %v262 = vsel %vm261, %v250, 0
    %v264 = vsel %vm261, %v260, 0
    %266 = vmatprep.subr.mxu0 0.0
    %267 = vmatpush1.xpose.msra.mxu0 0.0
    %268 = vmatprep.subr.mxu0 0.0
    %269 = vmatpush1.xpose.msra.mxu0 0.0
    %270 = vmatprep.subr.mxu0 0.0
    %271 = vmatpush1.xpose.msra.mxu0 0.0
    %272 = vmatprep.subr.mxu0 0.0
    %273 = vmatpush1.xpose.msra.mxu0 0.0
    %274 = vmatprep.subr.mxu0 0.0
    %275 = vmatpush1.xpose.msra.mxu0 0.0
    %276 = vmatprep.subr.mxu0 0.0
    %277 = vmatpush1.xpose.msra.mxu0 0.0
    %278 = vmatprep.subr.mxu0 0.0
    %279 = vmatpush1.xpose.msra.mxu0 0.0
    %280 = vmatprep.subr.mxu0 0.0
    %281 = vmatpush1.xpose.msra.mxu0 0.0
    %282 = vmatprep.subr.mxu0 0.0
    %283 = vmatpush1.xpose.msra.mxu0 0.0
    %284 = vmatprep.subr.mxu0 0.0
    %285 = vmatpush1.xpose.msra.mxu0 0.0
    %286 = vmatprep.subr.mxu0 0.0
    %287 = vmatpush1.xpose.msra.mxu0 0.0
    %288 = vmatprep.subr.mxu0 0.0
    %289 = vmatpush1.xpose.msra.mxu0 0.0
    %290 = vmatprep.subr.mxu0 0.0
    %291 = vmatpush1.xpose.msra.mxu0 0.0
    %292 = vmatprep.subr.mxu0 0.0
    %293 = vmatpush1.xpose.msra.mxu0 0.0
    %294 = vmatprep.subr.mxu0 0.0
    %295 = vmatpush1.xpose.msra.mxu0 0.0
    %296 = vmatprep.subr.mxu0 0.0
    %297 = vmatpush1.xpose.msra.mxu0 %v264
    %298 = vmatprep.subr.mxu0 0.0
    %299 = vmatpush2.xpose.msra.mxu0 0.0
    %300 = vmatprep.subr.mxu0 0.0
    %301 = vmatpush2.xpose.msra.mxu0 0.0
    %302 = vmatprep.subr.mxu0 0.0
    %303 = vmatpush2.xpose.msra.mxu0 0.0
    %304 = vmatprep.subr.mxu0 0.0
    %305 = vmatpush2.xpose.msra.mxu0 0.0
    %306 = vmatprep.subr.mxu0 0.0
    %307 = vmatpush2.xpose.msra.mxu0 0.0
    %308 = vmatprep.subr.mxu0 0.0
    %309 = vmatpush2.xpose.msra.mxu0 0.0
    %310 = vmatprep.subr.mxu0 0.0
    %311 = vmatpush2.xpose.msra.mxu0 0.0
    %312 = vmatprep.subr.mxu0 0.0
    %313 = vmatpush2.xpose.msra.mxu0 0.0
    %314 = vmatprep.subr.mxu0 0.0
    %315 = vmatpush2.xpose.msra.mxu0 0.0
    %316 = vmatprep.subr.mxu0 0.0
    %317 = vmatpush2.xpose.msra.mxu0 0.0
    %318 = vmatprep.subr.mxu0 0.0
    %319 = vmatpush2.xpose.msra.mxu0 0.0
    %320 = vmatprep.subr.mxu0 0.0
    %321 = vmatpush2.xpose.msra.mxu0 0.0
    %322 = vmatprep.subr.mxu0 0.0
    %323 = vmatpush2.xpose.msra.mxu0 0.0
    %324 = vmatprep.subr.mxu0 0.0
    %325 = vmatpush2.xpose.msra.mxu0 0.0
    %326 = vmatprep.subr.mxu0 0.0
    %327 = vmatpush2.xpose.msra.mxu0 0.0
    %328 = vmatprep.subr.mxu0 0.0
    %329 = vmatpush2.xpose.msra.mxu0 0.0
    %330 = vmatprep.mubr.f32.mxu0 0.0
    %331 = vmatmul.mubr.f32.gmra.mxu0 %v262
    %v332 = vpop.f32.mrf.mxu0
    %v333 = vadd.f32 0.0, %v332
    %v334 = vpop.f32.mrf.mxu0
    %335 = vdwg.mxu0
    %337 = vrot.lane.b32.xlu0 %v256, 96
    %v338 = vpop.permute.xlu0 %337
    %v339 = vsel %vm261, %v256, 0
    %v341 = vsel %vm261, %v338, 0
    %343 = vmatprep.subr.mxu0 0.0
    %344 = vmatpush1.xpose.msra.mxu0 0.0
    %345 = vmatprep.subr.mxu0 0.0
    %346 = vmatpush1.xpose.msra.mxu0 0.0
    %347 = vmatprep.subr.mxu0 0.0
    %348 = vmatpush1.xpose.msra.mxu0 0.0
    %349 = vmatprep.subr.mxu0 0.0
    %350 = vmatpush1.xpose.msra.mxu0 0.0
    %351 = vmatprep.subr.mxu0 0.0
    %352 = vmatpush1.xpose.msra.mxu0 0.0
    %353 = vmatprep.subr.mxu0 0.0
    %354 = vmatpush1.xpose.msra.mxu0 0.0
    %355 = vmatprep.subr.mxu0 0.0
    %356 = vmatpush1.xpose.msra.mxu0 0.0
    %357 = vmatprep.subr.mxu0 0.0
    %358 = vmatpush1.xpose.msra.mxu0 0.0
    %359 = vmatprep.subr.mxu0 0.0
    %360 = vmatpush1.xpose.msra.mxu0 0.0
    %361 = vmatprep.subr.mxu0 0.0
    %362 = vmatpush1.xpose.msra.mxu0 0.0
    %363 = vmatprep.subr.mxu0 0.0
    %364 = vmatpush1.xpose.msra.mxu0 0.0
    %365 = vmatprep.subr.mxu0 0.0
    %366 = vmatpush1.xpose.msra.mxu0 0.0
    %367 = vmatprep.subr.mxu0 0.0
    %368 = vmatpush1.xpose.msra.mxu0 0.0
    %369 = vmatprep.subr.mxu0 0.0
    %370 = vmatpush1.xpose.msra.mxu0 0.0
    %371 = vmatprep.subr.mxu0 0.0
    %372 = vmatpush1.xpose.msra.mxu0 0.0
    %373 = vmatprep.subr.mxu0 0.0
    %374 = vmatpush1.xpose.msra.mxu0 %v341
    %375 = vmatprep.subr.mxu0 0.0
    %376 = vmatpush2.xpose.msra.mxu0 0.0
    %377 = vmatprep.subr.mxu0 0.0
    %378 = vmatpush2.xpose.msra.mxu0 0.0
    %379 = vmatprep.subr.mxu0 0.0
    %380 = vmatpush2.xpose.msra.mxu0 0.0
    %381 = vmatprep.subr.mxu0 0.0
    %382 = vmatpush2.xpose.msra.mxu0 0.0
    %383 = vmatprep.subr.mxu0 0.0
    %384 = vmatpush2.xpose.msra.mxu0 0.0
    %385 = vmatprep.subr.mxu0 0.0
    %386 = vmatpush2.xpose.msra.mxu0 0.0
    %387 = vmatprep.subr.mxu0 0.0
    %388 = vmatpush2.xpose.msra.mxu0 0.0
    %389 = vmatprep.subr.mxu0 0.0
    %390 = vmatpush2.xpose.msra.mxu0 0.0
    %391 = vmatprep.subr.mxu0 0.0
    %392 = vmatpush2.xpose.msra.mxu0 0.0
    %393 = vmatprep.subr.mxu0 0.0
    %394 = vmatpush2.xpose.msra.mxu0 0.0
    %395 = vmatprep.subr.mxu0 0.0
    %396 = vmatpush2.xpose.msra.mxu0 0.0
    %397 = vmatprep.subr.mxu0 0.0
    %398 = vmatpush2.xpose.msra.mxu0 0.0
    %399 = vmatprep.subr.mxu0 0.0
    %400 = vmatpush2.xpose.msra.mxu0 0.0
    %401 = vmatprep.subr.mxu0 0.0
    %402 = vmatpush2.xpose.msra.mxu0 0.0
    %403 = vmatprep.subr.mxu0 0.0
    %404 = vmatpush2.xpose.msra.mxu0 0.0
    %405 = vmatprep.subr.mxu0 0.0
    %406 = vmatpush2.xpose.msra.mxu0 0.0
    %407 = vmatprep.mubr.f32.mxu0 0.0
    %408 = vmatmul.mubr.f32.gmra.mxu0 %v339
    %v409 = vpop.f32.mrf.mxu0
    %v410 = vadd.f32 0.0, %v409
    %v411 = vpop.f32.mrf.mxu0
    %412 = vdwg.mxu0
    %v413 = vsel %vm261, %v333, -inf
    %414 = vmax.xlane.f32.xlu0 %v413
    %v415 = vpop.xlane.xlu0 %414
    %v416 = vsel %vm261, %v410, -inf
    %417 = vmax.xlane.f32.xlu0 %v416
    %v418 = vpop.xlane.xlu0 %417
    %v419 = vsub.f32 %v333, %v415
    %v420 = vsub.f32 %v410, %v418
    %v421 = vmul.f32 %v419, 1.442695
    %v422 = vpow.pop %v421
    %v423 = vmul.f32 %v420, 1.442695
    %v424 = vpow.pop %v423
    %v425 = vsel %vm261, %v422, 0.0
    %426 = vadd.xlane.f32.xlu0 %v425
    %v427 = vpop.xlane.xlu0 %426
    %v428 = vsel %vm261, %v424, 0.0
    %429 = vadd.xlane.f32.xlu0 %v428
    %v430 = vpop.xlane.xlu0 %429
    %v431 = vrcp.pop %v427
    %v432 = vmul.f32 %v422, %v431
    %v433 = vrcp.pop %v430
    %v434 = vmul.f32 %v424, %v433
    %435 = vrot.lane.b32.xlu0 %v250, 64
    %v436 = vpop.permute.xlu0 %435
    %v439 = vsel %vm261, %v432, 0
    %441 = vmatprep.subr.mxu0 0.0
    %442 = vmatpush1.msra.mxu0 0.0
    %443 = vmatprep.subr.mxu0 0.0
    %444 = vmatpush1.msra.mxu0 0.0
    %445 = vmatprep.subr.mxu0 0.0
    %446 = vmatpush1.msra.mxu0 0.0
    %447 = vmatprep.subr.mxu0 0.0
    %448 = vmatpush1.msra.mxu0 0.0
    %449 = vmatprep.subr.mxu0 0.0
    %450 = vmatpush1.msra.mxu0 0.0
    %451 = vmatprep.subr.mxu0 0.0
    %452 = vmatpush1.msra.mxu0 0.0
    %453 = vmatprep.subr.mxu0 0.0
    %454 = vmatpush1.msra.mxu0 0.0
    %455 = vmatprep.subr.mxu0 0.0
    %456 = vmatpush1.msra.mxu0 0.0
    %457 = vmatprep.subr.mxu0 0.0
    %458 = vmatpush1.msra.mxu0 0.0
    %459 = vmatprep.subr.mxu0 0.0
    %460 = vmatpush1.msra.mxu0 0.0
    %461 = vmatprep.subr.mxu0 0.0
    %462 = vmatpush1.msra.mxu0 0.0
    %463 = vmatprep.subr.mxu0 0.0
    %464 = vmatpush1.msra.mxu0 0.0
    %465 = vmatprep.subr.mxu0 0.0
    %466 = vmatpush1.msra.mxu0 0.0
    %467 = vmatprep.subr.mxu0 0.0
    %468 = vmatpush1.msra.mxu0 0.0
    %469 = vmatprep.subr.mxu0 0.0
    %470 = vmatpush1.msra.mxu0 0.0
    %471 = vmatprep.subr.mxu0 0.0
    %472 = vmatpush1.msra.mxu0 %v436
    %473 = vmatprep.subr.mxu0 0.0
    %474 = vmatpush2.msra.mxu0 0.0
    %475 = vmatprep.subr.mxu0 0.0
    %476 = vmatpush2.msra.mxu0 0.0
    %477 = vmatprep.subr.mxu0 0.0
    %478 = vmatpush2.msra.mxu0 0.0
    %479 = vmatprep.subr.mxu0 0.0
    %480 = vmatpush2.msra.mxu0 0.0
    %481 = vmatprep.subr.mxu0 0.0
    %482 = vmatpush2.msra.mxu0 0.0
    %483 = vmatprep.subr.mxu0 0.0
    %484 = vmatpush2.msra.mxu0 0.0
    %485 = vmatprep.subr.mxu0 0.0
    %486 = vmatpush2.msra.mxu0 0.0
    %487 = vmatprep.subr.mxu0 0.0
    %488 = vmatpush2.msra.mxu0 0.0
    %489 = vmatprep.subr.mxu0 0.0
    %490 = vmatpush2.msra.mxu0 0.0
    %491 = vmatprep.subr.mxu0 0.0
    %492 = vmatpush2.msra.mxu0 0.0
    %493 = vmatprep.subr.mxu0 0.0
    %494 = vmatpush2.msra.mxu0 0.0
    %495 = vmatprep.subr.mxu0 0.0
    %496 = vmatpush2.msra.mxu0 0.0
    %497 = vmatprep.subr.mxu0 0.0
    %498 = vmatpush2.msra.mxu0 0.0
    %499 = vmatprep.subr.mxu0 0.0
    %500 = vmatpush2.msra.mxu0 0.0
    %501 = vmatprep.subr.mxu0 0.0
    %502 = vmatpush2.msra.mxu0 0.0
    %503 = vmatprep.subr.mxu0 0.0
    %504 = vmatpush2.msra.mxu0 0.0
    %505 = vmatprep.mubr.f32.mxu0 0.0
    %506 = vmatmul.mubr.f32.gmra.mxu0 %v439
    %v507 = vpop.f32.mrf.mxu0
    %v508 = vadd.f32 0.0, %v507
    %v509 = vpop.f32.mrf.mxu0
    %510 = vdwg.mxu0
    %511 = vrot.lane.b32.xlu0 %v256, 64
    %v512 = vpop.permute.xlu0 %511
    %v515 = vsel %vm261, %v434, 0
    %517 = vmatprep.subr.mxu0 0.0
    %518 = vmatpush1.msra.mxu0 0.0
    %519 = vmatprep.subr.mxu0 0.0
    %520 = vmatpush1.msra.mxu0 0.0
    %521 = vmatprep.subr.mxu0 0.0
    %522 = vmatpush1.msra.mxu0 0.0
    %523 = vmatprep.subr.mxu0 0.0
    %524 = vmatpush1.msra.mxu0 0.0
    %525 = vmatprep.subr.mxu0 0.0
    %526 = vmatpush1.msra.mxu0 0.0
    %527 = vmatprep.subr.mxu0 0.0
    %528 = vmatpush1.msra.mxu0 0.0
    %529 = vmatprep.subr.mxu0 0.0
    %530 = vmatpush1.msra.mxu0 0.0
    %531 = vmatprep.subr.mxu0 0.0
    %532 = vmatpush1.msra.mxu0 0.0
    %533 = vmatprep.subr.mxu0 0.0
    %534 = vmatpush1.msra.mxu0 0.0
    %535 = vmatprep.subr.mxu0 0.0
    %536 = vmatpush1.msra.mxu0 0.0
    %537 = vmatprep.subr.mxu0 0.0
    %538 = vmatpush1.msra.mxu0 0.0
    %539 = vmatprep.subr.mxu0 0.0
    %540 = vmatpush1.msra.mxu0 0.0
    %541 = vmatprep.subr.mxu0 0.0
    %542 = vmatpush1.msra.mxu0 0.0
    %543 = vmatprep.subr.mxu0 0.0
    %544 = vmatpush1.msra.mxu0 0.0
    %545 = vmatprep.subr.mxu0 0.0
    %546 = vmatpush1.msra.mxu0 0.0
    %547 = vmatprep.subr.mxu0 0.0
    %548 = vmatpush1.msra.mxu0 %v512
    %549 = vmatprep.subr.mxu0 0.0
    %550 = vmatpush2.msra.mxu0 0.0
    %551 = vmatprep.subr.mxu0 0.0
    %552 = vmatpush2.msra.mxu0 0.0
    %553 = vmatprep.subr.mxu0 0.0
    %554 = vmatpush2.msra.mxu0 0.0
    %555 = vmatprep.subr.mxu0 0.0
    %556 = vmatpush2.msra.mxu0 0.0
    %557 = vmatprep.subr.mxu0 0.0
    %558 = vmatpush2.msra.mxu0 0.0
    %559 = vmatprep.subr.mxu0 0.0
    %560 = vmatpush2.msra.mxu0 0.0
    %561 = vmatprep.subr.mxu0 0.0
    %562 = vmatpush2.msra.mxu0 0.0
    %563 = vmatprep.subr.mxu0 0.0
    %564 = vmatpush2.msra.mxu0 0.0
    %565 = vmatprep.subr.mxu0 0.0
    %566 = vmatpush2.msra.mxu0 0.0
    %567 = vmatprep.subr.mxu0 0.0
    %568 = vmatpush2.msra.mxu0 0.0
    %569 = vmatprep.subr.mxu0 0.0
    %570 = vmatpush2.msra.mxu0 0.0
    %571 = vmatprep.subr.mxu0 0.0
    %572 = vmatpush2.msra.mxu0 0.0
    %573 = vmatprep.subr.mxu0 0.0
    %574 = vmatpush2.msra.mxu0 0.0
    %575 = vmatprep.subr.mxu0 0.0
    %576 = vmatpush2.msra.mxu0 0.0
    %577 = vmatprep.subr.mxu0 0.0
    %578 = vmatpush2.msra.mxu0 0.0
    %579 = vmatprep.subr.mxu0 0.0
    %580 = vmatpush2.msra.mxu0 0.0
    %581 = vmatprep.mubr.f32.mxu0 0.0
    %582 = vmatmul.mubr.f32.gmra.mxu0 %v515
    %v583 = vpop.f32.mrf.mxu0
    %v584 = vadd.f32 0.0, %v583
    %v585 = vpop.f32.mrf.mxu0
    %586 = vdwg.mxu0
    %587 = vrot.lane.b32.xlu0 %v250, 120
    %v588 = vpop.permute.xlu0 %587
    %589 = vrot.lane.b32.xlu0 %v250, 88
    %v590 = vpop.permute.xlu0 %589
    %v591 = vsel %vm261, %v588, 0
    %v593 = vsel %vm261, %v590, 0
    %595 = vmatprep.subr.mxu0 0.0
    %596 = vmatpush1.xpose.msra.mxu0 0.0
    %597 = vmatprep.subr.mxu0 0.0
    %598 = vmatpush1.xpose.msra.mxu0 0.0
    %599 = vmatprep.subr.mxu0 0.0
    %600 = vmatpush1.xpose.msra.mxu0 0.0
    %601 = vmatprep.subr.mxu0 0.0
    %602 = vmatpush1.xpose.msra.mxu0 0.0
    %603 = vmatprep.subr.mxu0 0.0
    %604 = vmatpush1.xpose.msra.mxu0 0.0
    %605 = vmatprep.subr.mxu0 0.0
    %606 = vmatpush1.xpose.msra.mxu0 0.0
    %607 = vmatprep.subr.mxu0 0.0
    %608 = vmatpush1.xpose.msra.mxu0 0.0
    %609 = vmatprep.subr.mxu0 0.0
    %610 = vmatpush1.xpose.msra.mxu0 0.0
    %611 = vmatprep.subr.mxu0 0.0
    %612 = vmatpush1.xpose.msra.mxu0 0.0
    %613 = vmatprep.subr.mxu0 0.0
    %614 = vmatpush1.xpose.msra.mxu0 0.0
    %615 = vmatprep.subr.mxu0 0.0
    %616 = vmatpush1.xpose.msra.mxu0 0.0
    %617 = vmatprep.subr.mxu0 0.0
    %618 = vmatpush1.xpose.msra.mxu0 0.0
    %619 = vmatprep.subr.mxu0 0.0
    %620 = vmatpush1.xpose.msra.mxu0 0.0
    %621 = vmatprep.subr.mxu0 0.0
    %622 = vmatpush1.xpose.msra.mxu0 0.0
    %623 = vmatprep.subr.mxu0 0.0
    %624 = vmatpush1.xpose.msra.mxu0 0.0
    %625 = vmatprep.subr.mxu0 0.0
    %626 = vmatpush1.xpose.msra.mxu0 %v593
    %627 = vmatprep.subr.mxu0 0.0
    %628 = vmatpush2.xpose.msra.mxu0 0.0
    %629 = vmatprep.subr.mxu0 0.0
    %630 = vmatpush2.xpose.msra.mxu0 0.0
    %631 = vmatprep.subr.mxu0 0.0
    %632 = vmatpush2.xpose.msra.mxu0 0.0
    %633 = vmatprep.subr.mxu0 0.0
    %634 = vmatpush2.xpose.msra.mxu0 0.0
    %635 = vmatprep.subr.mxu0 0.0
    %636 = vmatpush2.xpose.msra.mxu0 0.0
    %637 = vmatprep.subr.mxu0 0.0
    %638 = vmatpush2.xpose.msra.mxu0 0.0
    %639 = vmatprep.subr.mxu0 0.0
    %640 = vmatpush2.xpose.msra.mxu0 0.0
    %641 = vmatprep.subr.mxu0 0.0
    %642 = vmatpush2.xpose.msra.mxu0 0.0
    %643 = vmatprep.subr.mxu0 0.0
    %644 = vmatpush2.xpose.msra.mxu0 0.0
    %645 = vmatprep.subr.mxu0 0.0
    %646 = vmatpush2.xpose.msra.mxu0 0.0
    %647 = vmatprep.subr.mxu0 0.0
    %648 = vmatpush2.xpose.msra.mxu0 0.0
    %649 = vmatprep.subr.mxu0 0.0
    %650 = vmatpush2.xpose.msra.mxu0 0.0
    %651 = vmatprep.subr.mxu0 0.0
    %652 = vmatpush2.xpose.msra.mxu0 0.0
    %653 = vmatprep.subr.mxu0 0.0
    %654 = vmatpush2.xpose.msra.mxu0 0.0
    %655 = vmatprep.subr.mxu0 0.0
    %656 = vmatpush2.xpose.msra.mxu0 0.0
    %657 = vmatprep.subr.mxu0 0.0
    %658 = vmatpush2.xpose.msra.mxu0 0.0
    %659 = vmatprep.mubr.f32.mxu0 0.0
    %660 = vmatmul.mubr.f32.gmra.mxu0 %v591
    %v661 = vpop.f32.mrf.mxu0
    %v662 = vadd.f32 0.0, %v661
    %v663 = vpop.f32.mrf.mxu0
    %664 = vdwg.mxu0
    %665 = vrot.lane.b32.xlu0 %v256, 120
    %v666 = vpop.permute.xlu0 %665
    %667 = vrot.lane.b32.xlu0 %v256, 88
    %v668 = vpop.permute.xlu0 %667
    %v669 = vsel %vm261, %v666, 0
    %v671 = vsel %vm261, %v668, 0
    %673 = vmatprep.subr.mxu0 0.0
    %674 = vmatpush1.xpose.msra.mxu0 0.0
    %675 = vmatprep.subr.mxu0 0.0
    %676 = vmatpush1.xpose.msra.mxu0 0.0
    %677 = vmatprep.subr.mxu0 0.0
    %678 = vmatpush1.xpose.msra.mxu0 0.0
    %679 = vmatprep.subr.mxu0 0.0
    %680 = vmatpush1.xpose.msra.mxu0 0.0
    %681 = vmatprep.subr.mxu0 0.0
    %682 = vmatpush1.xpose.msra.mxu0 0.0
    %683 = vmatprep.subr.mxu0 0.0
    %684 = vmatpush1.xpose.msra.mxu0 0.0
    %685 = vmatprep.subr.mxu0 0.0
    %686 = vmatpush1.xpose.msra.mxu0 0.0
    %687 = vmatprep.subr.mxu0 0.0
    %688 = vmatpush1.xpose.msra.mxu0 0.0
    %689 = vmatprep.subr.mxu0 0.0
    %690 = vmatpush1.xpose.msra.mxu0 0.0
    %691 = vmatprep.subr.mxu0 0.0
    %692 = vmatpush1.xpose.msra.mxu0 0.0
    %693 = vmatprep.subr.mxu0 0.0
    %694 = vmatpush1.xpose.msra.mxu0 0.0
    %695 = vmatprep.subr.mxu0 0.0
    %696 = vmatpush1.xpose.msra.mxu0 0.0
    %697 = vmatprep.subr.mxu0 0.0
    %698 = vmatpush1.xpose.msra.mxu0 0.0
    %699 = vmatprep.subr.mxu0 0.0
    %700 = vmatpush1.xpose.msra.mxu0 0.0
    %701 = vmatprep.subr.mxu0 0.0
    %702 = vmatpush1.xpose.msra.mxu0 0.0
    %703 = vmatprep.subr.mxu0 0.0
    %704 = vmatpush1.xpose.msra.mxu0 %v671
    %705 = vmatprep.subr.mxu0 0.0
    %706 = vmatpush2.xpose.msra.mxu0 0.0
    %707 = vmatprep.subr.mxu0 0.0
    %708 = vmatpush2.xpose.msra.mxu0 0.0
    %709 = vmatprep.subr.mxu0 0.0
    %710 = vmatpush2.xpose.msra.mxu0 0.0
    %711 = vmatprep.subr.mxu0 0.0
    %712 = vmatpush2.xpose.msra.mxu0 0.0
    %713 = vmatprep.subr.mxu0 0.0
    %714 = vmatpush2.xpose.msra.mxu0 0.0
    %715 = vmatprep.subr.mxu0 0.0
    %716 = vmatpush2.xpose.msra.mxu0 0.0
    %717 = vmatprep.subr.mxu0 0.0
    %718 = vmatpush2.xpose.msra.mxu0 0.0
    %719 = vmatprep.subr.mxu0 0.0
    %720 = vmatpush2.xpose.msra.mxu0 0.0
    %721 = vmatprep.subr.mxu0 0.0
    %722 = vmatpush2.xpose.msra.mxu0 0.0
    %723 = vmatprep.subr.mxu0 0.0
    %724 = vmatpush2.xpose.msra.mxu0 0.0
    %725 = vmatprep.subr.mxu0 0.0
    %726 = vmatpush2.xpose.msra.mxu0 0.0
    %727 = vmatprep.subr.mxu0 0.0
    %728 = vmatpush2.xpose.msra.mxu0 0.0
    %729 = vmatprep.subr.mxu0 0.0
    %730 = vmatpush2.xpose.msra.mxu0 0.0
    %731 = vmatprep.subr.mxu0 0.0
    %732 = vmatpush2.xpose.msra.mxu0 0.0
    %733 = vmatprep.subr.mxu0 0.0
    %734 = vmatpush2.xpose.msra.mxu0 0.0
    %735 = vmatprep.subr.mxu0 0.0
    %736 = vmatpush2.xpose.msra.mxu0 0.0
    %737 = vmatprep.mubr.f32.mxu0 0.0
    %738 = vmatmul.mubr.f32.gmra.mxu0 %v669
    %v739 = vpop.f32.mrf.mxu0
    %v740 = vadd.f32 0.0, %v739
    %v741 = vpop.f32.mrf.mxu0
    %742 = vdwg.mxu0
    %v743 = vsel %vm261, %v662, -inf
    %744 = vmax.xlane.f32.xlu0 %v743
    %v745 = vpop.xlane.xlu0 %744
    %v746 = vsel %vm261, %v740, -inf
    %747 = vmax.xlane.f32.xlu0 %v746
    %v748 = vpop.xlane.xlu0 %747
    %v749 = vsub.f32 %v662, %v745
    %v750 = vsub.f32 %v740, %v748
    %v751 = vmul.f32 %v749, 1.442695
    %v752 = vpow.pop %v751
    %v753 = vmul.f32 %v750, 1.442695
    %v754 = vpow.pop %v753
    %v755 = vsel %vm261, %v752, 0.0
    %756 = vadd.xlane.f32.xlu0 %v755
    %v757 = vpop.xlane.xlu0 %756
    %v758 = vsel %vm261, %v754, 0.0
    %759 = vadd.xlane.f32.xlu0 %v758
    %v760 = vpop.xlane.xlu0 %759
    %v761 = vrcp.pop %v757
    %v762 = vmul.f32 %v752, %v761
    %v763 = vrcp.pop %v760
    %v764 = vmul.f32 %v754, %v763
    %765 = vrot.lane.b32.xlu0 %v250, 56
    %v766 = vpop.permute.xlu0 %765
    %v769 = vsel %vm261, %v762, 0
    %771 = vmatprep.subr.mxu0 0.0
    %772 = vmatpush1.msra.mxu0 0.0
    %773 = vmatprep.subr.mxu0 0.0
    %774 = vmatpush1.msra.mxu0 0.0
    %775 = vmatprep.subr.mxu0 0.0
    %776 = vmatpush1.msra.mxu0 0.0
    %777 = vmatprep.subr.mxu0 0.0
    %778 = vmatpush1.msra.mxu0 0.0
    %779 = vmatprep.subr.mxu0 0.0
    %780 = vmatpush1.msra.mxu0 0.0
    %781 = vmatprep.subr.mxu0 0.0
    %782 = vmatpush1.msra.mxu0 0.0
    %783 = vmatprep.subr.mxu0 0.0
    %784 = vmatpush1.msra.mxu0 0.0
    %785 = vmatprep.subr.mxu0 0.0
    %786 = vmatpush1.msra.mxu0 0.0
    %787 = vmatprep.subr.mxu0 0.0
    %788 = vmatpush1.msra.mxu0 0.0
    %789 = vmatprep.subr.mxu0 0.0
    %790 = vmatpush1.msra.mxu0 0.0
    %791 = vmatprep.subr.mxu0 0.0
    %792 = vmatpush1.msra.mxu0 0.0
    %793 = vmatprep.subr.mxu0 0.0
    %794 = vmatpush1.msra.mxu0 0.0
    %795 = vmatprep.subr.mxu0 0.0
    %796 = vmatpush1.msra.mxu0 0.0
    %797 = vmatprep.subr.mxu0 0.0
    %798 = vmatpush1.msra.mxu0 0.0
    %799 = vmatprep.subr.mxu0 0.0
    %800 = vmatpush1.msra.mxu0 0.0
    %801 = vmatprep.subr.mxu0 0.0
    %802 = vmatpush1.msra.mxu0 %v766
    %803 = vmatprep.subr.mxu0 0.0
    %804 = vmatpush2.msra.mxu0 0.0
    %805 = vmatprep.subr.mxu0 0.0
    %806 = vmatpush2.msra.mxu0 0.0
    %807 = vmatprep.subr.mxu0 0.0
    %808 = vmatpush2.msra.mxu0 0.0
    %809 = vmatprep.subr.mxu0 0.0
    %810 = vmatpush2.msra.mxu0 0.0
    %811 = vmatprep.subr.mxu0 0.0
    %812 = vmatpush2.msra.mxu0 0.0
    %813 = vmatprep.subr.mxu0 0.0
    %814 = vmatpush2.msra.mxu0 0.0
    %815 = vmatprep.subr.mxu0 0.0
    %816 = vmatpush2.msra.mxu0 0.0
    %817 = vmatprep.subr.mxu0 0.0
    %818 = vmatpush2.msra.mxu0 0.0
    %819 = vmatprep.subr.mxu0 0.0
    %820 = vmatpush2.msra.mxu0 0.0
    %821 = vmatprep.subr.mxu0 0.0
    %822 = vmatpush2.msra.mxu0 0.0
    %823 = vmatprep.subr.mxu0 0.0
    %824 = vmatpush2.msra.mxu0 0.0
    %825 = vmatprep.subr.mxu0 0.0
    %826 = vmatpush2.msra.mxu0 0.0
    %827 = vmatprep.subr.mxu0 0.0
    %828 = vmatpush2.msra.mxu0 0.0
    %829 = vmatprep.subr.mxu0 0.0
    %830 = vmatpush2.msra.mxu0 0.0
    %831 = vmatprep.subr.mxu0 0.0
    %832 = vmatpush2.msra.mxu0 0.0
    %833 = vmatprep.subr.mxu0 0.0
    %834 = vmatpush2.msra.mxu0 0.0
    %835 = vmatprep.mubr.f32.mxu0 0.0
    %836 = vmatmul.mubr.f32.gmra.mxu0 %v769
    %v837 = vpop.f32.mrf.mxu0
    %v838 = vadd.f32 0.0, %v837
    %v839 = vpop.f32.mrf.mxu0
    %840 = vdwg.mxu0
    %841 = vrot.lane.b32.xlu0 %v256, 56
    %v842 = vpop.permute.xlu0 %841
    %v845 = vsel %vm261, %v764, 0
    %847 = vmatprep.subr.mxu0 0.0
    %848 = vmatpush1.msra.mxu0 0.0
    %849 = vmatprep.subr.mxu0 0.0
    %850 = vmatpush1.msra.mxu0 0.0
    %851 = vmatprep.subr.mxu0 0.0
    %852 = vmatpush1.msra.mxu0 0.0
    %853 = vmatprep.subr.mxu0 0.0
    %854 = vmatpush1.msra.mxu0 0.0
    %855 = vmatprep.subr.mxu0 0.0
    %856 = vmatpush1.msra.mxu0 0.0
    %857 = vmatprep.subr.mxu0 0.0
    %858 = vmatpush1.msra.mxu0 0.0
    %859 = vmatprep.subr.mxu0 0.0
    %860 = vmatpush1.msra.mxu0 0.0
    %861 = vmatprep.subr.mxu0 0.0
    %862 = vmatpush1.msra.mxu0 0.0
    %863 = vmatprep.subr.mxu0 0.0
    %864 = vmatpush1.msra.mxu0 0.0
    %865 = vmatprep.subr.mxu0 0.0
    %866 = vmatpush1.msra.mxu0 0.0
    %867 = vmatprep.subr.mxu0 0.0
    %868 = vmatpush1.msra.mxu0 0.0
    %869 = vmatprep.subr.mxu0 0.0
    %870 = vmatpush1.msra.mxu0 0.0
    %871 = vmatprep.subr.mxu0 0.0
    %872 = vmatpush1.msra.mxu0 0.0
    %873 = vmatprep.subr.mxu0 0.0
    %874 = vmatpush1.msra.mxu0 0.0
    %875 = vmatprep.subr.mxu0 0.0
    %876 = vmatpush1.msra.mxu0 0.0
    %877 = vmatprep.subr.mxu0 0.0
    %878 = vmatpush1.msra.mxu0 %v842
    %879 = vmatprep.subr.mxu0 0.0
    %880 = vmatpush2.msra.mxu0 0.0
    %881 = vmatprep.subr.mxu0 0.0
    %882 = vmatpush2.msra.mxu0 0.0
    %883 = vmatprep.subr.mxu0 0.0
    %884 = vmatpush2.msra.mxu0 0.0
    %885 = vmatprep.subr.mxu0 0.0
    %886 = vmatpush2.msra.mxu0 0.0
    %887 = vmatprep.subr.mxu0 0.0
    %888 = vmatpush2.msra.mxu0 0.0
    %889 = vmatprep.subr.mxu0 0.0
    %890 = vmatpush2.msra.mxu0 0.0
    %891 = vmatprep.subr.mxu0 0.0
    %892 = vmatpush2.msra.mxu0 0.0
    %893 = vmatprep.subr.mxu0 0.0
    %894 = vmatpush2.msra.mxu0 0.0
    %895 = vmatprep.subr.mxu0 0.0
    %896 = vmatpush2.msra.mxu0 0.0
    %897 = vmatprep.subr.mxu0 0.0
    %898 = vmatpush2.msra.mxu0 0.0
    %899 = vmatprep.subr.mxu0 0.0
    %900 = vmatpush2.msra.mxu0 0.0
    %901 = vmatprep.subr.mxu0 0.0
    %902 = vmatpush2.msra.mxu0 0.0
    %903 = vmatprep.subr.mxu0 0.0
    %904 = vmatpush2.msra.mxu0 0.0
    %905 = vmatprep.subr.mxu0 0.0
    %906 = vmatpush2.msra.mxu0 0.0
    %907 = vmatprep.subr.mxu0 0.0
    %908 = vmatpush2.msra.mxu0 0.0
    %909 = vmatprep.subr.mxu0 0.0
    %910 = vmatpush2.msra.mxu0 0.0
    %911 = vmatprep.mubr.f32.mxu0 0.0
    %912 = vmatmul.mubr.f32.gmra.mxu0 %v845
    %v913 = vpop.f32.mrf.mxu0
    %v914 = vadd.f32 0.0, %v913
    %v915 = vpop.f32.mrf.mxu0
    %916 = vdwg.mxu0
    %917 = vrot.lane.b32.xlu0 %v250, 112
    %v918 = vpop.permute.xlu0 %917
    %919 = vrot.lane.b32.xlu0 %v250, 80
    %v920 = vpop.permute.xlu0 %919
    %v921 = vsel %vm261, %v918, 0
    %v923 = vsel %vm261, %v920, 0
    %925 = vmatprep.subr.mxu0 0.0
    %926 = vmatpush1.xpose.msra.mxu0 0.0
    %927 = vmatprep.subr.mxu0 0.0
    %928 = vmatpush1.xpose.msra.mxu0 0.0
    %929 = vmatprep.subr.mxu0 0.0
    %930 = vmatpush1.xpose.msra.mxu0 0.0
    %931 = vmatprep.subr.mxu0 0.0
    %932 = vmatpush1.xpose.msra.mxu0 0.0
    %933 = vmatprep.subr.mxu0 0.0
    %934 = vmatpush1.xpose.msra.mxu0 0.0
    %935 = vmatprep.subr.mxu0 0.0
    %936 = vmatpush1.xpose.msra.mxu0 0.0
    %937 = vmatprep.subr.mxu0 0.0
    %938 = vmatpush1.xpose.msra.mxu0 0.0
    %939 = vmatprep.subr.mxu0 0.0
    %940 = vmatpush1.xpose.msra.mxu0 0.0
    %941 = vmatprep.subr.mxu0 0.0
    %942 = vmatpush1.xpose.msra.mxu0 0.0
    %943 = vmatprep.subr.mxu0 0.0
    %944 = vmatpush1.xpose.msra.mxu0 0.0
    %945 = vmatprep.subr.mxu0 0.0
    %946 = vmatpush1.xpose.msra.mxu0 0.0
    %947 = vmatprep.subr.mxu0 0.0
    %948 = vmatpush1.xpose.msra.mxu0 0.0
    %949 = vmatprep.subr.mxu0 0.0
    %950 = vmatpush1.xpose.msra.mxu0 0.0
    %951 = vmatprep.subr.mxu0 0.0
    %952 = vmatpush1.xpose.msra.mxu0 0.0
    %953 = vmatprep.subr.mxu0 0.0
    %954 = vmatpush1.xpose.msra.mxu0 0.0
    %955 = vmatprep.subr.mxu0 0.0
    %956 = vmatpush1.xpose.msra.mxu0 %v923
    %957 = vmatprep.subr.mxu0 0.0
    %958 = vmatpush2.xpose.msra.mxu0 0.0
    %959 = vmatprep.subr.mxu0 0.0
    %960 = vmatpush2.xpose.msra.mxu0 0.0
    %961 = vmatprep.subr.mxu0 0.0
    %962 = vmatpush2.xpose.msra.mxu0 0.0
    %963 = vmatprep.subr.mxu0 0.0
    %964 = vmatpush2.xpose.msra.mxu0 0.0
    %965 = vmatprep.subr.mxu0 0.0
    %966 = vmatpush2.xpose.msra.mxu0 0.0
    %967 = vmatprep.subr.mxu0 0.0
    %968 = vmatpush2.xpose.msra.mxu0 0.0
    %969 = vmatprep.subr.mxu0 0.0
    %970 = vmatpush2.xpose.msra.mxu0 0.0
    %971 = vmatprep.subr.mxu0 0.0
    %972 = vmatpush2.xpose.msra.mxu0 0.0
    %973 = vmatprep.subr.mxu0 0.0
    %974 = vmatpush2.xpose.msra.mxu0 0.0
    %975 = vmatprep.subr.mxu0 0.0
    %976 = vmatpush2.xpose.msra.mxu0 0.0
    %977 = vmatprep.subr.mxu0 0.0
    %978 = vmatpush2.xpose.msra.mxu0 0.0
    %979 = vmatprep.subr.mxu0 0.0
    %980 = vmatpush2.xpose.msra.mxu0 0.0
    %981 = vmatprep.subr.mxu0 0.0
    %982 = vmatpush2.xpose.msra.mxu0 0.0
    %983 = vmatprep.subr.mxu0 0.0
    %984 = vmatpush2.xpose.msra.mxu0 0.0
    %985 = vmatprep.subr.mxu0 0.0
    %986 = vmatpush2.xpose.msra.mxu0 0.0
    %987 = vmatprep.subr.mxu0 0.0
    %988 = vmatpush2.xpose.msra.mxu0 0.0
    %989 = vmatprep.mubr.f32.mxu0 0.0
    %990 = vmatmul.mubr.f32.gmra.mxu0 %v921
    %v991 = vpop.f32.mrf.mxu0
    %v992 = vadd.f32 0.0, %v991
    %v993 = vpop.f32.mrf.mxu0
    %994 = vdwg.mxu0
    %995 = vrot.lane.b32.xlu0 %v256, 112
    %v996 = vpop.permute.xlu0 %995
    %997 = vrot.lane.b32.xlu0 %v256, 80
    %v998 = vpop.permute.xlu0 %997
    %v999 = vsel %vm261, %v996, 0
    %v1001 = vsel %vm261, %v998, 0
    %1003 = vmatprep.subr.mxu0 0.0
    %1004 = vmatpush1.xpose.msra.mxu0 0.0
    %1005 = vmatprep.subr.mxu0 0.0
    %1006 = vmatpush1.xpose.msra.mxu0 0.0
    %1007 = vmatprep.subr.mxu0 0.0
    %1008 = vmatpush1.xpose.msra.mxu0 0.0
    %1009 = vmatprep.subr.mxu0 0.0
    %1010 = vmatpush1.xpose.msra.mxu0 0.0
    %1011 = vmatprep.subr.mxu0 0.0
    %1012 = vmatpush1.xpose.msra.mxu0 0.0
    %1013 = vmatprep.subr.mxu0 0.0
    %1014 = vmatpush1.xpose.msra.mxu0 0.0
    %1015 = vmatprep.subr.mxu0 0.0
    %1016 = vmatpush1.xpose.msra.mxu0 0.0
    %1017 = vmatprep.subr.mxu0 0.0
    %1018 = vmatpush1.xpose.msra.mxu0 0.0
    %1019 = vmatprep.subr.mxu0 0.0
    %1020 = vmatpush1.xpose.msra.mxu0 0.0
    %1021 = vmatprep.subr.mxu0 0.0
    %1022 = vmatpush1.xpose.msra.mxu0 0.0
    %1023 = vmatprep.subr.mxu0 0.0
    %1024 = vmatpush1.xpose.msra.mxu0 0.0
    %1025 = vmatprep.subr.mxu0 0.0
    %1026 = vmatpush1.xpose.msra.mxu0 0.0
    %1027 = vmatprep.subr.mxu0 0.0
    %1028 = vmatpush1.xpose.msra.mxu0 0.0
    %1029 = vmatprep.subr.mxu0 0.0
    %1030 = vmatpush1.xpose.msra.mxu0 0.0
    %1031 = vmatprep.subr.mxu0 0.0
    %1032 = vmatpush1.xpose.msra.mxu0 0.0
    %1033 = vmatprep.subr.mxu0 0.0
    %1034 = vmatpush1.xpose.msra.mxu0 %v1001
    %1035 = vmatprep.subr.mxu0 0.0
    %1036 = vmatpush2.xpose.msra.mxu0 0.0
    %1037 = vmatprep.subr.mxu0 0.0
    %1038 = vmatpush2.xpose.msra.mxu0 0.0
    %1039 = vmatprep.subr.mxu0 0.0
    %1040 = vmatpush2.xpose.msra.mxu0 0.0
    %1041 = vmatprep.subr.mxu0 0.0
    %1042 = vmatpush2.xpose.msra.mxu0 0.0
    %1043 = vmatprep.subr.mxu0 0.0
    %1044 = vmatpush2.xpose.msra.mxu0 0.0
    %1045 = vmatprep.subr.mxu0 0.0
    %1046 = vmatpush2.xpose.msra.mxu0 0.0
    %1047 = vmatprep.subr.mxu0 0.0
    %1048 = vmatpush2.xpose.msra.mxu0 0.0
    %1049 = vmatprep.subr.mxu0 0.0
    %1050 = vmatpush2.xpose.msra.mxu0 0.0
    %1051 = vmatprep.subr.mxu0 0.0
    %1052 = vmatpush2.xpose.msra.mxu0 0.0
    %1053 = vmatprep.subr.mxu0 0.0
    %1054 = vmatpush2.xpose.msra.mxu0 0.0
    %1055 = vmatprep.subr.mxu0 0.0
    %1056 = vmatpush2.xpose.msra.mxu0 0.0
    %1057 = vmatprep.subr.mxu0 0.0
    %1058 = vmatpush2.xpose.msra.mxu0 0.0
    %1059 = vmatprep.subr.mxu0 0.0
    %1060 = vmatpush2.xpose.msra.mxu0 0.0
    %1061 = vmatprep.subr.mxu0 0.0
    %1062 = vmatpush2.xpose.msra.mxu0 0.0
    %1063 = vmatprep.subr.mxu0 0.0
    %1064 = vmatpush2.xpose.msra.mxu0 0.0
    %1065 = vmatprep.subr.mxu0 0.0
    %1066 = vmatpush2.xpose.msra.mxu0 0.0
    %1067 = vmatprep.mubr.f32.mxu0 0.0
    %1068 = vmatmul.mubr.f32.gmra.mxu0 %v999
    %v1069 = vpop.f32.mrf.mxu0
    %v1070 = vadd.f32 0.0, %v1069
    %v1071 = vpop.f32.mrf.mxu0
    %1072 = vdwg.mxu0
    %v1073 = vsel %vm261, %v992, -inf
    %1074 = vmax.xlane.f32.xlu0 %v1073
    %v1075 = vpop.xlane.xlu0 %1074
    %v1076 = vsel %vm261, %v1070, -inf
    %1077 = vmax.xlane.f32.xlu0 %v1076
    %v1078 = vpop.xlane.xlu0 %1077
    %v1079 = vsub.f32 %v992, %v1075
    %v1080 = vsub.f32 %v1070, %v1078
    %v1081 = vmul.f32 %v1079, 1.442695
    %v1082 = vpow.pop %v1081
    %v1083 = vmul.f32 %v1080, 1.442695
    %v1084 = vpow.pop %v1083
    %v1085 = vsel %vm261, %v1082, 0.0
    %1086 = vadd.xlane.f32.xlu0 %v1085
    %v1087 = vpop.xlane.xlu0 %1086
    %v1088 = vsel %vm261, %v1084, 0.0
    %1089 = vadd.xlane.f32.xlu0 %v1088
    %v1090 = vpop.xlane.xlu0 %1089
    %v1091 = vrcp.pop %v1087
    %v1092 = vmul.f32 %v1082, %v1091
    %v1093 = vrcp.pop %v1090
    %v1094 = vmul.f32 %v1084, %v1093
    %1095 = vrot.lane.b32.xlu0 %v250, 48
    %v1096 = vpop.permute.xlu0 %1095
    %v1099 = vsel %vm261, %v1092, 0
    %1101 = vmatprep.subr.mxu0 0.0
    %1102 = vmatpush1.msra.mxu0 0.0
    %1103 = vmatprep.subr.mxu0 0.0
    %1104 = vmatpush1.msra.mxu0 0.0
    %1105 = vmatprep.subr.mxu0 0.0
    %1106 = vmatpush1.msra.mxu0 0.0
    %1107 = vmatprep.subr.mxu0 0.0
    %1108 = vmatpush1.msra.mxu0 0.0
    %1109 = vmatprep.subr.mxu0 0.0
    %1110 = vmatpush1.msra.mxu0 0.0
    %1111 = vmatprep.subr.mxu0 0.0
    %1112 = vmatpush1.msra.mxu0 0.0
    %1113 = vmatprep.subr.mxu0 0.0
    %1114 = vmatpush1.msra.mxu0 0.0
    %1115 = vmatprep.subr.mxu0 0.0
    %1116 = vmatpush1.msra.mxu0 0.0
    %1117 = vmatprep.subr.mxu0 0.0
    %1118 = vmatpush1.msra.mxu0 0.0
    %1119 = vmatprep.subr.mxu0 0.0
    %1120 = vmatpush1.msra.mxu0 0.0
    %1121 = vmatprep.subr.mxu0 0.0
    %1122 = vmatpush1.msra.mxu0 0.0
    %1123 = vmatprep.subr.mxu0 0.0
    %1124 = vmatpush1.msra.mxu0 0.0
    %1125 = vmatprep.subr.mxu0 0.0
    %1126 = vmatpush1.msra.mxu0 0.0
    %1127 = vmatprep.subr.mxu0 0.0
    %1128 = vmatpush1.msra.mxu0 0.0
    %1129 = vmatprep.subr.mxu0 0.0
    %1130 = vmatpush1.msra.mxu0 0.0
    %1131 = vmatprep.subr.mxu0 0.0
    %1132 = vmatpush1.msra.mxu0 %v1096
    %1133 = vmatprep.subr.mxu0 0.0
    %1134 = vmatpush2.msra.mxu0 0.0
    %1135 = vmatprep.subr.mxu0 0.0
    %1136 = vmatpush2.msra.mxu0 0.0
    %1137 = vmatprep.subr.mxu0 0.0
    %1138 = vmatpush2.msra.mxu0 0.0
    %1139 = vmatprep.subr.mxu0 0.0
    %1140 = vmatpush2.msra.mxu0 0.0
    %1141 = vmatprep.subr.mxu0 0.0
    %1142 = vmatpush2.msra.mxu0 0.0
    %1143 = vmatprep.subr.mxu0 0.0
    %1144 = vmatpush2.msra.mxu0 0.0
    %1145 = vmatprep.subr.mxu0 0.0
    %1146 = vmatpush2.msra.mxu0 0.0
    %1147 = vmatprep.subr.mxu0 0.0
    %1148 = vmatpush2.msra.mxu0 0.0
    %1149 = vmatprep.subr.mxu0 0.0
    %1150 = vmatpush2.msra.mxu0 0.0
    %1151 = vmatprep.subr.mxu0 0.0
    %1152 = vmatpush2.msra.mxu0 0.0
    %1153 = vmatprep.subr.mxu0 0.0
    %1154 = vmatpush2.msra.mxu0 0.0
    %1155 = vmatprep.subr.mxu0 0.0
    %1156 = vmatpush2.msra.mxu0 0.0
    %1157 = vmatprep.subr.mxu0 0.0
    %1158 = vmatpush2.msra.mxu0 0.0
    %1159 = vmatprep.subr.mxu0 0.0
    %1160 = vmatpush2.msra.mxu0 0.0
    %1161 = vmatprep.subr.mxu0 0.0
    %1162 = vmatpush2.msra.mxu0 0.0
    %1163 = vmatprep.subr.mxu0 0.0
    %1164 = vmatpush2.msra.mxu0 0.0
    %1165 = vmatprep.mubr.f32.mxu0 0.0
    %1166 = vmatmul.mubr.f32.gmra.mxu0 %v1099
    %v1167 = vpop.f32.mrf.mxu0
    %v1168 = vadd.f32 0.0, %v1167
    %v1169 = vpop.f32.mrf.mxu0
    %1170 = vdwg.mxu0
    %1171 = vrot.lane.b32.xlu0 %v256, 48
    %v1172 = vpop.permute.xlu0 %1171
    %v1175 = vsel %vm261, %v1094, 0
    %1177 = vmatprep.subr.mxu0 0.0
    %1178 = vmatpush1.msra.mxu0 0.0
    %1179 = vmatprep.subr.mxu0 0.0
    %1180 = vmatpush1.msra.mxu0 0.0
    %1181 = vmatprep.subr.mxu0 0.0
    %1182 = vmatpush1.msra.mxu0 0.0
    %1183 = vmatprep.subr.mxu0 0.0
    %1184 = vmatpush1.msra.mxu0 0.0
    %1185 = vmatprep.subr.mxu0 0.0
    %1186 = vmatpush1.msra.mxu0 0.0
    %1187 = vmatprep.subr.mxu0 0.0
    %1188 = vmatpush1.msra.mxu0 0.0
    %1189 = vmatprep.subr.mxu0 0.0
    %1190 = vmatpush1.msra.mxu0 0.0
    %1191 = vmatprep.subr.mxu0 0.0
    %1192 = vmatpush1.msra.mxu0 0.0
    %1193 = vmatprep.subr.mxu0 0.0
    %1194 = vmatpush1.msra.mxu0 0.0
    %1195 = vmatprep.subr.mxu0 0.0
    %1196 = vmatpush1.msra.mxu0 0.0
    %1197 = vmatprep.subr.mxu0 0.0
    %1198 = vmatpush1.msra.mxu0 0.0
    %1199 = vmatprep.subr.mxu0 0.0
    %1200 = vmatpush1.msra.mxu0 0.0
    %1201 = vmatprep.subr.mxu0 0.0
    %1202 = vmatpush1.msra.mxu0 0.0
    %1203 = vmatprep.subr.mxu0 0.0
    %1204 = vmatpush1.msra.mxu0 0.0
    %1205 = vmatprep.subr.mxu0 0.0
    %1206 = vmatpush1.msra.mxu0 0.0
    %1207 = vmatprep.subr.mxu0 0.0
    %1208 = vmatpush1.msra.mxu0 %v1172
    %1209 = vmatprep.subr.mxu0 0.0
    %1210 = vmatpush2.msra.mxu0 0.0
    %1211 = vmatprep.subr.mxu0 0.0
    %1212 = vmatpush2.msra.mxu0 0.0
    %1213 = vmatprep.subr.mxu0 0.0
    %1214 = vmatpush2.msra.mxu0 0.0
    %1215 = vmatprep.subr.mxu0 0.0
    %1216 = vmatpush2.msra.mxu0 0.0
    %1217 = vmatprep.subr.mxu0 0.0
    %1218 = vmatpush2.msra.mxu0 0.0
    %1219 = vmatprep.subr.mxu0 0.0
    %1220 = vmatpush2.msra.mxu0 0.0
    %1221 = vmatprep.subr.mxu0 0.0
    %1222 = vmatpush2.msra.mxu0 0.0
    %1223 = vmatprep.subr.mxu0 0.0
    %1224 = vmatpush2.msra.mxu0 0.0
    %1225 = vmatprep.subr.mxu0 0.0
    %1226 = vmatpush2.msra.mxu0 0.0
    %1227 = vmatprep.subr.mxu0 0.0
    %1228 = vmatpush2.msra.mxu0 0.0
    %1229 = vmatprep.subr.mxu0 0.0
    %1230 = vmatpush2.msra.mxu0 0.0
    %1231 = vmatprep.subr.mxu0 0.0
    %1232 = vmatpush2.msra.mxu0 0.0
    %1233 = vmatprep.subr.mxu0 0.0
    %1234 = vmatpush2.msra.mxu0 0.0
    %1235 = vmatprep.subr.mxu0 0.0
    %1236 = vmatpush2.msra.mxu0 0.0
    %1237 = vmatprep.subr.mxu0 0.0
    %1238 = vmatpush2.msra.mxu0 0.0
    %1239 = vmatprep.subr.mxu0 0.0
    %1240 = vmatpush2.msra.mxu0 0.0
    %1241 = vmatprep.mubr.f32.mxu0 0.0
    %1242 = vmatmul.mubr.f32.gmra.mxu0 %v1175
    %v1243 = vpop.f32.mrf.mxu0
    %v1244 = vadd.f32 0.0, %v1243
    %v1245 = vpop.f32.mrf.mxu0
    %1246 = vdwg.mxu0
    %1247 = vrot.lane.b32.xlu0 %v250, 104
    %v1248 = vpop.permute.xlu0 %1247
    %1249 = vrot.lane.b32.xlu0 %v250, 72
    %v1250 = vpop.permute.xlu0 %1249
    %v1251 = vsel %vm261, %v1248, 0
    %v1253 = vsel %vm261, %v1250, 0
    %1255 = vmatprep.subr.mxu0 0.0
    %1256 = vmatpush1.xpose.msra.mxu0 0.0
    %1257 = vmatprep.subr.mxu0 0.0
    %1258 = vmatpush1.xpose.msra.mxu0 0.0
    %1259 = vmatprep.subr.mxu0 0.0
    %1260 = vmatpush1.xpose.msra.mxu0 0.0
    %1261 = vmatprep.subr.mxu0 0.0
    %1262 = vmatpush1.xpose.msra.mxu0 0.0
    %1263 = vmatprep.subr.mxu0 0.0
    %1264 = vmatpush1.xpose.msra.mxu0 0.0
    %1265 = vmatprep.subr.mxu0 0.0
    %1266 = vmatpush1.xpose.msra.mxu0 0.0
    %1267 = vmatprep.subr.mxu0 0.0
    %1268 = vmatpush1.xpose.msra.mxu0 0.0
    %1269 = vmatprep.subr.mxu0 0.0
    %1270 = vmatpush1.xpose.msra.mxu0 0.0
    %1271 = vmatprep.subr.mxu0 0.0
    %1272 = vmatpush1.xpose.msra.mxu0 0.0
    %1273 = vmatprep.subr.mxu0 0.0
    %1274 = vmatpush1.xpose.msra.mxu0 0.0
    %1275 = vmatprep.subr.mxu0 0.0
    %1276 = vmatpush1.xpose.msra.mxu0 0.0
    %1277 = vmatprep.subr.mxu0 0.0
    %1278 = vmatpush1.xpose.msra.mxu0 0.0
    %1279 = vmatprep.subr.mxu0 0.0
    %1280 = vmatpush1.xpose.msra.mxu0 0.0
    %1281 = vmatprep.subr.mxu0 0.0
    %1282 = vmatpush1.xpose.msra.mxu0 0.0
    %1283 = vmatprep.subr.mxu0 0.0
    %1284 = vmatpush1.xpose.msra.mxu0 0.0
    %1285 = vmatprep.subr.mxu0 0.0
    %1286 = vmatpush1.xpose.msra.mxu0 %v1253
    %1287 = vmatprep.subr.mxu0 0.0
    %1288 = vmatpush2.xpose.msra.mxu0 0.0
    %1289 = vmatprep.subr.mxu0 0.0
    %1290 = vmatpush2.xpose.msra.mxu0 0.0
    %1291 = vmatprep.subr.mxu0 0.0
    %1292 = vmatpush2.xpose.msra.mxu0 0.0
    %1293 = vmatprep.subr.mxu0 0.0
    %1294 = vmatpush2.xpose.msra.mxu0 0.0
    %1295 = vmatprep.subr.mxu0 0.0
    %1296 = vmatpush2.xpose.msra.mxu0 0.0
    %1297 = vmatprep.subr.mxu0 0.0
    %1298 = vmatpush2.xpose.msra.mxu0 0.0
    %1299 = vmatprep.subr.mxu0 0.0
    %1300 = vmatpush2.xpose.msra.mxu0 0.0
    %1301 = vmatprep.subr.mxu0 0.0
    %1302 = vmatpush2.xpose.msra.mxu0 0.0
    %1303 = vmatprep.subr.mxu0 0.0
    %1304 = vmatpush2.xpose.msra.mxu0 0.0
    %1305 = vmatprep.subr.mxu0 0.0
    %1306 = vmatpush2.xpose.msra.mxu0 0.0
    %1307 = vmatprep.subr.mxu0 0.0
    %1308 = vmatpush2.xpose.msra.mxu0 0.0
    %1309 = vmatprep.subr.mxu0 0.0
    %1310 = vmatpush2.xpose.msra.mxu0 0.0
    %1311 = vmatprep.subr.mxu0 0.0
    %1312 = vmatpush2.xpose.msra.mxu0 0.0
    %1313 = vmatprep.subr.mxu0 0.0
    %1314 = vmatpush2.xpose.msra.mxu0 0.0
    %1315 = vmatprep.subr.mxu0 0.0
    %1316 = vmatpush2.xpose.msra.mxu0 0.0
    %1317 = vmatprep.subr.mxu0 0.0
    %1318 = vmatpush2.xpose.msra.mxu0 0.0
    %1319 = vmatprep.mubr.f32.mxu0 0.0
    %1320 = vmatmul.mubr.f32.gmra.mxu0 %v1251
    %v1321 = vpop.f32.mrf.mxu0
    %v1322 = vadd.f32 0.0, %v1321
    %v1323 = vpop.f32.mrf.mxu0
    %1324 = vdwg.mxu0
    %1325 = vrot.lane.b32.xlu0 %v256, 104
    %v1326 = vpop.permute.xlu0 %1325
    %1327 = vrot.lane.b32.xlu0 %v256, 72
    %v1328 = vpop.permute.xlu0 %1327
    %v1329 = vsel %vm261, %v1326, 0
    %v1331 = vsel %vm261, %v1328, 0
    %1333 = vmatprep.subr.mxu0 0.0
    %1334 = vmatpush1.xpose.msra.mxu0 0.0
    %1335 = vmatprep.subr.mxu0 0.0
    %1336 = vmatpush1.xpose.msra.mxu0 0.0
    %1337 = vmatprep.subr.mxu0 0.0
    %1338 = vmatpush1.xpose.msra.mxu0 0.0
    %1339 = vmatprep.subr.mxu0 0.0
    %1340 = vmatpush1.xpose.msra.mxu0 0.0
    %1341 = vmatprep.subr.mxu0 0.0
    %1342 = vmatpush1.xpose.msra.mxu0 0.0
    %1343 = vmatprep.subr.mxu0 0.0
    %1344 = vmatpush1.xpose.msra.mxu0 0.0
    %1345 = vmatprep.subr.mxu0 0.0
    %1346 = vmatpush1.xpose.msra.mxu0 0.0
    %1347 = vmatprep.subr.mxu0 0.0
    %1348 = vmatpush1.xpose.msra.mxu0 0.0
    %1349 = vmatprep.subr.mxu0 0.0
    %1350 = vmatpush1.xpose.msra.mxu0 0.0
    %1351 = vmatprep.subr.mxu0 0.0
    %1352 = vmatpush1.xpose.msra.mxu0 0.0
    %1353 = vmatprep.subr.mxu0 0.0
    %1354 = vmatpush1.xpose.msra.mxu0 0.0
    %1355 = vmatprep.subr.mxu0 0.0
    %1356 = vmatpush1.xpose.msra.mxu0 0.0
    %1357 = vmatprep.subr.mxu0 0.0
    %1358 = vmatpush1.xpose.msra.mxu0 0.0
    %1359 = vmatprep.subr.mxu0 0.0
    %1360 = vmatpush1.xpose.msra.mxu0 0.0
    %1361 = vmatprep.subr.mxu0 0.0
    %1362 = vmatpush1.xpose.msra.mxu0 0.0
    %1363 = vmatprep.subr.mxu0 0.0
    %1364 = vmatpush1.xpose.msra.mxu0 %v1331
    %1365 = vmatprep.subr.mxu0 0.0
    %1366 = vmatpush2.xpose.msra.mxu0 0.0
    %1367 = vmatprep.subr.mxu0 0.0
    %1368 = vmatpush2.xpose.msra.mxu0 0.0
    %1369 = vmatprep.subr.mxu0 0.0
    %1370 = vmatpush2.xpose.msra.mxu0 0.0
    %1371 = vmatprep.subr.mxu0 0.0
    %1372 = vmatpush2.xpose.msra.mxu0 0.0
    %1373 = vmatprep.subr.mxu0 0.0
    %1374 = vmatpush2.xpose.msra.mxu0 0.0
    %1375 = vmatprep.subr.mxu0 0.0
    %1376 = vmatpush2.xpose.msra.mxu0 0.0
    %1377 = vmatprep.subr.mxu0 0.0
    %1378 = vmatpush2.xpose.msra.mxu0 0.0
    %1379 = vmatprep.subr.mxu0 0.0
    %1380 = vmatpush2.xpose.msra.mxu0 0.0
    %1381 = vmatprep.subr.mxu0 0.0
    %1382 = vmatpush2.xpose.msra.mxu0 0.0
    %1383 = vmatprep.subr.mxu0 0.0
    %1384 = vmatpush2.xpose.msra.mxu0 0.0
    %1385 = vmatprep.subr.mxu0 0.0
    %1386 = vmatpush2.xpose.msra.mxu0 0.0
    %1387 = vmatprep.subr.mxu0 0.0
    %1388 = vmatpush2.xpose.msra.mxu0 0.0
    %1389 = vmatprep.subr.mxu0 0.0
    %1390 = vmatpush2.xpose.msra.mxu0 0.0
    %1391 = vmatprep.subr.mxu0 0.0
    %1392 = vmatpush2.xpose.msra.mxu0 0.0
    %1393 = vmatprep.subr.mxu0 0.0
    %1394 = vmatpush2.xpose.msra.mxu0 0.0
    %1395 = vmatprep.subr.mxu0 0.0
    %1396 = vmatpush2.xpose.msra.mxu0 0.0
    %1397 = vmatprep.mubr.f32.mxu0 0.0
    %1398 = vmatmul.mubr.f32.gmra.mxu0 %v1329
    %v1399 = vpop.f32.mrf.mxu0
    %v1400 = vadd.f32 0.0, %v1399
    %v1401 = vpop.f32.mrf.mxu0
    %1402 = vdwg.mxu0
    %v1403 = vsel %vm261, %v1322, -inf
    %1404 = vmax.xlane.f32.xlu0 %v1403
    %v1405 = vpop.xlane.xlu0 %1404
    %v1406 = vsel %vm261, %v1400, -inf
    %1407 = vmax.xlane.f32.xlu0 %v1406
    %v1408 = vpop.xlane.xlu0 %1407
    %v1409 = vsub.f32 %v1322, %v1405
    %v1410 = vsub.f32 %v1400, %v1408
    %v1411 = vmul.f32 %v1409, 1.442695
    %v1412 = vpow.pop %v1411
    %v1413 = vmul.f32 %v1410, 1.442695
    %v1414 = vpow.pop %v1413
    %v1415 = vsel %vm261, %v1412, 0.0
    %1416 = vadd.xlane.f32.xlu0 %v1415
    %v1417 = vpop.xlane.xlu0 %1416
    %v1418 = vsel %vm261, %v1414, 0.0
    %1419 = vadd.xlane.f32.xlu0 %v1418
    %v1420 = vpop.xlane.xlu0 %1419
    %v1421 = vrcp.pop %v1417
    %v1422 = vmul.f32 %v1412, %v1421
    %v1423 = vrcp.pop %v1420
    %v1424 = vmul.f32 %v1414, %v1423
    %1425 = vrot.lane.b32.xlu0 %v250, 40
    %v1426 = vpop.permute.xlu0 %1425
    %v1429 = vsel %vm261, %v1422, 0
    %1431 = vmatprep.subr.mxu0 0.0
    %1432 = vmatpush1.msra.mxu0 0.0
    %1433 = vmatprep.subr.mxu0 0.0
    %1434 = vmatpush1.msra.mxu0 0.0
    %1435 = vmatprep.subr.mxu0 0.0
    %1436 = vmatpush1.msra.mxu0 0.0
    %1437 = vmatprep.subr.mxu0 0.0
    %1438 = vmatpush1.msra.mxu0 0.0
    %1439 = vmatprep.subr.mxu0 0.0
    %1440 = vmatpush1.msra.mxu0 0.0
    %1441 = vmatprep.subr.mxu0 0.0
    %1442 = vmatpush1.msra.mxu0 0.0
    %1443 = vmatprep.subr.mxu0 0.0
    %1444 = vmatpush1.msra.mxu0 0.0
    %1445 = vmatprep.subr.mxu0 0.0
    %1446 = vmatpush1.msra.mxu0 0.0
    %1447 = vmatprep.subr.mxu0 0.0
    %1448 = vmatpush1.msra.mxu0 0.0
    %1449 = vmatprep.subr.mxu0 0.0
    %1450 = vmatpush1.msra.mxu0 0.0
    %1451 = vmatprep.subr.mxu0 0.0
    %1452 = vmatpush1.msra.mxu0 0.0
    %1453 = vmatprep.subr.mxu0 0.0
    %1454 = vmatpush1.msra.mxu0 0.0
    %1455 = vmatprep.subr.mxu0 0.0
    %1456 = vmatpush1.msra.mxu0 0.0
    %1457 = vmatprep.subr.mxu0 0.0
    %1458 = vmatpush1.msra.mxu0 0.0
    %1459 = vmatprep.subr.mxu0 0.0
    %1460 = vmatpush1.msra.mxu0 0.0
    %1461 = vmatprep.subr.mxu0 0.0
    %1462 = vmatpush1.msra.mxu0 %v1426
    %1463 = vmatprep.subr.mxu0 0.0
    %1464 = vmatpush2.msra.mxu0 0.0
    %1465 = vmatprep.subr.mxu0 0.0
    %1466 = vmatpush2.msra.mxu0 0.0
    %1467 = vmatprep.subr.mxu0 0.0
    %1468 = vmatpush2.msra.mxu0 0.0
    %1469 = vmatprep.subr.mxu0 0.0
    %1470 = vmatpush2.msra.mxu0 0.0
    %1471 = vmatprep.subr.mxu0 0.0
    %1472 = vmatpush2.msra.mxu0 0.0
    %1473 = vmatprep.subr.mxu0 0.0
    %1474 = vmatpush2.msra.mxu0 0.0
    %1475 = vmatprep.subr.mxu0 0.0
    %1476 = vmatpush2.msra.mxu0 0.0
    %1477 = vmatprep.subr.mxu0 0.0
    %1478 = vmatpush2.msra.mxu0 0.0
    %1479 = vmatprep.subr.mxu0 0.0
    %1480 = vmatpush2.msra.mxu0 0.0
    %1481 = vmatprep.subr.mxu0 0.0
    %1482 = vmatpush2.msra.mxu0 0.0
    %1483 = vmatprep.subr.mxu0 0.0
    %1484 = vmatpush2.msra.mxu0 0.0
    %1485 = vmatprep.subr.mxu0 0.0
    %1486 = vmatpush2.msra.mxu0 0.0
    %1487 = vmatprep.subr.mxu0 0.0
    %1488 = vmatpush2.msra.mxu0 0.0
    %1489 = vmatprep.subr.mxu0 0.0
    %1490 = vmatpush2.msra.mxu0 0.0
    %1491 = vmatprep.subr.mxu0 0.0
    %1492 = vmatpush2.msra.mxu0 0.0
    %1493 = vmatprep.subr.mxu0 0.0
    %1494 = vmatpush2.msra.mxu0 0.0
    %1495 = vmatprep.mubr.f32.mxu0 0.0
    %1496 = vmatmul.mubr.f32.gmra.mxu0 %v1429
    %v1497 = vpop.f32.mrf.mxu0
    %v1498 = vadd.f32 0.0, %v1497
    %v1499 = vpop.f32.mrf.mxu0
    %1500 = vdwg.mxu0
    %1501 = vrot.lane.b32.xlu0 %v256, 40
    %v1502 = vpop.permute.xlu0 %1501
    %v1505 = vsel %vm261, %v1424, 0
    %1507 = vmatprep.subr.mxu0 0.0
    %1508 = vmatpush1.msra.mxu0 0.0
    %1509 = vmatprep.subr.mxu0 0.0
    %1510 = vmatpush1.msra.mxu0 0.0
    %1511 = vmatprep.subr.mxu0 0.0
    %1512 = vmatpush1.msra.mxu0 0.0
    %1513 = vmatprep.subr.mxu0 0.0
    %1514 = vmatpush1.msra.mxu0 0.0
    %1515 = vmatprep.subr.mxu0 0.0
    %1516 = vmatpush1.msra.mxu0 0.0
    %1517 = vmatprep.subr.mxu0 0.0
    %1518 = vmatpush1.msra.mxu0 0.0
    %1519 = vmatprep.subr.mxu0 0.0
    %1520 = vmatpush1.msra.mxu0 0.0
    %1521 = vmatprep.subr.mxu0 0.0
    %1522 = vmatpush1.msra.mxu0 0.0
    %1523 = vmatprep.subr.mxu0 0.0
    %1524 = vmatpush1.msra.mxu0 0.0
    %1525 = vmatprep.subr.mxu0 0.0
    %1526 = vmatpush1.msra.mxu0 0.0
    %1527 = vmatprep.subr.mxu0 0.0
    %1528 = vmatpush1.msra.mxu0 0.0
    %1529 = vmatprep.subr.mxu0 0.0
    %1530 = vmatpush1.msra.mxu0 0.0
    %1531 = vmatprep.subr.mxu0 0.0
    %1532 = vmatpush1.msra.mxu0 0.0
    %1533 = vmatprep.subr.mxu0 0.0
    %1534 = vmatpush1.msra.mxu0 0.0
    %1535 = vmatprep.subr.mxu0 0.0
    %1536 = vmatpush1.msra.mxu0 0.0
    %1537 = vmatprep.subr.mxu0 0.0
    %1538 = vmatpush1.msra.mxu0 %v1502
    %1539 = vmatprep.subr.mxu0 0.0
    %1540 = vmatpush2.msra.mxu0 0.0
    %1541 = vmatprep.subr.mxu0 0.0
    %1542 = vmatpush2.msra.mxu0 0.0
    %1543 = vmatprep.subr.mxu0 0.0
    %1544 = vmatpush2.msra.mxu0 0.0
    %1545 = vmatprep.subr.mxu0 0.0
    %1546 = vmatpush2.msra.mxu0 0.0
    %1547 = vmatprep.subr.mxu0 0.0
    %1548 = vmatpush2.msra.mxu0 0.0
    %1549 = vmatprep.subr.mxu0 0.0
    %1550 = vmatpush2.msra.mxu0 0.0
    %1551 = vmatprep.subr.mxu0 0.0
    %1552 = vmatpush2.msra.mxu0 0.0
    %1553 = vmatprep.subr.mxu0 0.0
    %1554 = vmatpush2.msra.mxu0 0.0
    %1555 = vmatprep.subr.mxu0 0.0
    %1556 = vmatpush2.msra.mxu0 0.0
    %1557 = vmatprep.subr.mxu0 0.0
    %1558 = vmatpush2.msra.mxu0 0.0
    %1559 = vmatprep.subr.mxu0 0.0
    %1560 = vmatpush2.msra.mxu0 0.0
    %1561 = vmatprep.subr.mxu0 0.0
    %1562 = vmatpush2.msra.mxu0 0.0
    %1563 = vmatprep.subr.mxu0 0.0
    %1564 = vmatpush2.msra.mxu0 0.0
    %1565 = vmatprep.subr.mxu0 0.0
    %1566 = vmatpush2.msra.mxu0 0.0
    %1567 = vmatprep.subr.mxu0 0.0
    %1568 = vmatpush2.msra.mxu0 0.0
    %1569 = vmatprep.subr.mxu0 0.0
    %1570 = vmatpush2.msra.mxu0 0.0
    %1571 = vmatprep.mubr.f32.mxu0 0.0
    %1572 = vmatmul.mubr.f32.gmra.mxu0 %v1505
    %v1573 = vpop.f32.mrf.mxu0
    %v1574 = vadd.f32 0.0, %v1573
    %v1575 = vpop.f32.mrf.mxu0
    %1576 = vdwg.mxu0
    %1579 = vrot.lane.b32.xlu0 %v838, 8
    %v1580 = vpop.permute.xlu0 %1579
    %1581 = vrot.lane.b32.xlu0 %v914, 8
    %v1582 = vpop.permute.xlu0 %1581
    %1587 = vrot.lane.b32.xlu0 %v1168, 16
    %v1588 = vpop.permute.xlu0 %1587
    %1589 = vrot.lane.b32.xlu0 %v1244, 16
    %v1590 = vpop.permute.xlu0 %1589
    %1595 = vrot.lane.b32.xlu0 %v1498, 24
    %v1596 = vpop.permute.xlu0 %1595
    %1597 = vrot.lane.b32.xlu0 %v1574, 24
    %v1598 = vpop.permute.xlu0 %1597
    %v1601 = vsel %vm261, %v508, %v1580
    %v1602 = vsel %vm261, %v584, %v1582
    %vm1603 = vcmask 130048
    %v1604 = vsel %vm1603, %v1601, %v1588
    %v1605 = vsel %vm1603, %v1602, %v1590
    %vm1606 = vcmask 195584
    %v1607 = vsel %vm1606, %v1604, %v1596
    %v1608 = vsel %vm1606, %v1605, %v1598
    %v1609 = vld [vmem:[%s4] sm:$0xff]
    %v1610 = vld [vmem:[%s4 + $0x8] sm:$0xff]
    %v1611 = vld [vmem:[%s4 + $0x10] sm:$0xff]
    %v1612 = vld [vmem:[%s4 + $0x18] sm:$0xff]
    %v1613 = vlaneseq
    %v1614 = vshrl.u32 %v1613, 7
    %v1615 = vsub.s32 0, %v1614
    %v1616 = vrot.slane %v33, %v1615
    %v1618 = vsel %vm39, %v1607, 0
    %v1621 = vsel %vm39, %v1608, 0
    %1623 = vmatprep.subr.mxu0 0.0
    %1624 = vmatpush1.msra.mxu0 0.0
    %1625 = vmatprep.subr.mxu0 0.0
    %1626 = vmatpush1.msra.mxu0 0.0
    %1627 = vmatprep.subr.mxu0 0.0
    %1628 = vmatpush1.msra.mxu0 0.0
    %1629 = vmatprep.subr.mxu0 0.0
    %1630 = vmatpush1.msra.mxu0 0.0
    %1631 = vmatprep.subr.mxu0 0.0
    %1632 = vmatpush1.msra.mxu0 0.0
    %1633 = vmatprep.subr.mxu0 0.0
    %1634 = vmatpush1.msra.mxu0 0.0
    %1635 = vmatprep.subr.mxu0 0.0
    %1636 = vmatpush1.msra.mxu0 0.0
    %1637 = vmatprep.subr.mxu0 0.0
    %1638 = vmatpush1.msra.mxu0 0.0
    %1639 = vmatprep.subr.mxu0 0.0
    %1640 = vmatpush1.msra.mxu0 0.0
    %1641 = vmatprep.subr.mxu0 0.0
    %1642 = vmatpush1.msra.mxu0 0.0
    %1643 = vmatprep.subr.mxu0 0.0
    %1644 = vmatpush1.msra.mxu0 0.0
    %1645 = vmatprep.subr.mxu0 0.0
    %1646 = vmatpush1.msra.mxu0 0.0
    %1647 = vmatprep.subr.mxu0 0.0
    %1648 = vmatpush1.msra.mxu0 %v1612
    %1649 = vmatprep.subr.mxu0 0.0
    %1650 = vmatpush1.msra.mxu0 %v1611
    %1651 = vmatprep.subr.mxu0 0.0
    %1652 = vmatpush1.msra.mxu0 %v1610
    %1653 = vmatprep.subr.mxu0 0.0
    %1654 = vmatpush1.msra.mxu0 %v1609
    %1655 = vmatprep.subr.mxu0 0.0
    %1656 = vmatpush2.msra.mxu0 0.0
    %1657 = vmatprep.subr.mxu0 0.0
    %1658 = vmatpush2.msra.mxu0 0.0
    %1659 = vmatprep.subr.mxu0 0.0
    %1660 = vmatpush2.msra.mxu0 0.0
    %1661 = vmatprep.subr.mxu0 0.0
    %1662 = vmatpush2.msra.mxu0 0.0
    %1663 = vmatprep.subr.mxu0 0.0
    %1664 = vmatpush2.msra.mxu0 0.0
    %1665 = vmatprep.subr.mxu0 0.0
    %1666 = vmatpush2.msra.mxu0 0.0
    %1667 = vmatprep.subr.mxu0 0.0
    %1668 = vmatpush2.msra.mxu0 0.0
    %1669 = vmatprep.subr.mxu0 0.0
    %1670 = vmatpush2.msra.mxu0 0.0
    %1671 = vmatprep.subr.mxu0 0.0
    %1672 = vmatpush2.msra.mxu0 0.0
    %1673 = vmatprep.subr.mxu0 0.0
    %1674 = vmatpush2.msra.mxu0 0.0
    %1675 = vmatprep.subr.mxu0 0.0
    %1676 = vmatpush2.msra.mxu0 0.0
    %1677 = vmatprep.subr.mxu0 0.0
    %1678 = vmatpush2.msra.mxu0 0.0
    %1679 = vmatprep.subr.mxu0 0.0
    %1680 = vmatpush2.msra.mxu0 0.0
    %1681 = vmatprep.subr.mxu0 0.0
    %1682 = vmatpush2.msra.mxu0 0.0
    %1683 = vmatprep.subr.mxu0 0.0
    %1684 = vmatpush2.msra.mxu0 0.0
    %1685 = vmatprep.subr.mxu0 0.0
    %1686 = vmatpush2.msra.mxu0 0.0
    %1687 = vmatprep.mubr.f32.mxu0 0.0
    %1688 = vmatmul.mubr.f32.gmra.mxu0 %v1618
    %v1689 = vpop.f32.mrf.mxu0
    %v1690 = vadd.f32 %v1616, %v1689
    %v1691 = vpop.f32.mrf.mxu0
    %1692 = vmatprep.mubr.f32.mxu0 0.0
    %1693 = vmatmul.mubr.f32.gmra.mxu0 %v1621
    %v1694 = vpop.f32.mrf.mxu0
    %v1695 = vadd.f32 %v1616, %v1694
    %v1696 = vpop.f32.mrf.mxu0
    %1697 = vdwg.mxu0
    %v1698 = vmul.f32 %v248, 0.5
    %v1699 = vmul.f32 %v254, 0.5
    %v1700 = vmul.f32 %v248, 0.044715
    %v1701 = vmul.f32 %v254, 0.044715
    %v1702 = vmul.f32 %v1700, %v248
    %v1703 = vmul.f32 %v1701, %v254
    %v1704 = vmul.f32 %v1702, %v248
    %v1705 = vmul.f32 %v1703, %v254
    %v1706 = vadd.f32 %v248, %v1704
    %v1707 = vadd.f32 %v254, %v1705
    %v1708 = vmul.f32 %v1706, 0.7978846
    %v1709 = vmul.f32 %v1707, 0.7978846
    %v1710 = vtanh.pop %v1708
    %v1711 = vtanh.pop %v1709
    %v1712 = vadd.f32 %v1710, 1.0
    %v1713 = vadd.f32 %v1711, 1.0
    %v1714 = vmul.f32 %v1698, %v1712
    %v1715 = vmul.f32 %v1699, %v1713
    %v1716 = vld [vmem:[%s5] sm:$0xff]
    %v1717 = vld [vmem:[%s5 + $0x8] sm:$0xff]
    %v1718 = vld [vmem:[%s5 + $0x10] sm:$0xff]
    %v1719 = vld [vmem:[%s5 + $0x18] sm:$0xff]
    %v1720 = vld [vmem:[%s5 + $0x20] sm:$0xff]
    %v1721 = vld [vmem:[%s5 + $0x28] sm:$0xff]
    %v1722 = vld [vmem:[%s5 + $0x30] sm:$0xff]
    %v1723 = vld [vmem:[%s5 + $0x38] sm:$0xff]
    %v1724 = vld [vmem:[%s5 + $0x40] sm:$0xff]
    %v1725 = vld [vmem:[%s5 + $0x48] sm:$0xff]
    %v1726 = vld [vmem:[%s5 + $0x50] sm:$0xff]
    %v1727 = vld [vmem:[%s5 + $0x58] sm:$0xff]
    %v1728 = vld [vmem:[%s5 + $0x60] sm:$0xff]
    %v1729 = vld [vmem:[%s5 + $0x68] sm:$0xff]
    %v1730 = vld [vmem:[%s5 + $0x70] sm:$0xff]
    %v1731 = vld [vmem:[%s5 + $0x78] sm:$0xff]
    %v1732 = vlaneseq
    %v1733 = vshrl.u32 %v1732, 7
    %v1734 = vsub.s32 0, %v1733
    %v1735 = vrot.slane %v34, %v1734
    %1736 = vmatprep.subr.mxu0 0.0
    %1737 = vmatpush1.msra.mxu0 %v1731
    %1738 = vmatprep.subr.mxu0 0.0
    %1739 = vmatpush1.msra.mxu0 %v1730
    %1740 = vmatprep.subr.mxu0 0.0
    %1741 = vmatpush1.msra.mxu0 %v1729
    %1742 = vmatprep.subr.mxu0 0.0
    %1743 = vmatpush1.msra.mxu0 %v1728
    %1744 = vmatprep.subr.mxu0 0.0
    %1745 = vmatpush1.msra.mxu0 %v1727
    %1746 = vmatprep.subr.mxu0 0.0
    %1747 = vmatpush1.msra.mxu0 %v1726
    %1748 = vmatprep.subr.mxu0 0.0
    %1749 = vmatpush1.msra.mxu0 %v1725
    %1750 = vmatprep.subr.mxu0 0.0
    %1751 = vmatpush1.msra.mxu0 %v1724
    %1752 = vmatprep.subr.mxu0 0.0
    %1753 = vmatpush1.msra.mxu0 %v1723
    %1754 = vmatprep.subr.mxu0 0.0
    %1755 = vmatpush1.msra.mxu0 %v1722
    %1756 = vmatprep.subr.mxu0 0.0
    %1757 = vmatpush1.msra.mxu0 %v1721
    %1758 = vmatprep.subr.mxu0 0.0
    %1759 = vmatpush1.msra.mxu0 %v1720
    %1760 = vmatprep.subr.mxu0 0.0
    %1761 = vmatpush1.msra.mxu0 %v1719
    %1762 = vmatprep.subr.mxu0 0.0
    %1763 = vmatpush1.msra.mxu0 %v1718
    %1764 = vmatprep.subr.mxu0 0.0
    %1765 = vmatpush1.msra.mxu0 %v1717
    %1766 = vmatprep.subr.mxu0 0.0
    %1767 = vmatpush1.msra.mxu0 %v1716
    %1768 = vmatprep.subr.mxu0 0.0
    %1769 = vmatpush2.msra.mxu0 0.0
    %1770 = vmatprep.subr.mxu0 0.0
    %1771 = vmatpush2.msra.mxu0 0.0
    %1772 = vmatprep.subr.mxu0 0.0
    %1773 = vmatpush2.msra.mxu0 0.0
    %1774 = vmatprep.subr.mxu0 0.0
    %1775 = vmatpush2.msra.mxu0 0.0
    %1776 = vmatprep.subr.mxu0 0.0
    %1777 = vmatpush2.msra.mxu0 0.0
    %1778 = vmatprep.subr.mxu0 0.0
    %1779 = vmatpush2.msra.mxu0 0.0
    %1780 = vmatprep.subr.mxu0 0.0
    %1781 = vmatpush2.msra.mxu0 0.0
    %1782 = vmatprep.subr.mxu0 0.0
    %1783 = vmatpush2.msra.mxu0 0.0
    %1784 = vmatprep.subr.mxu0 0.0
    %1785 = vmatpush2.msra.mxu0 0.0
    %1786 = vmatprep.subr.mxu0 0.0
    %1787 = vmatpush2.msra.mxu0 0.0
    %1788 = vmatprep.subr.mxu0 0.0
    %1789 = vmatpush2.msra.mxu0 0.0
    %1790 = vmatprep.subr.mxu0 0.0
    %1791 = vmatpush2.msra.mxu0 0.0
    %1792 = vmatprep.subr.mxu0 0.0
    %1793 = vmatpush2.msra.mxu0 0.0
    %1794 = vmatprep.subr.mxu0 0.0
    %1795 = vmatpush2.msra.mxu0 0.0
    %1796 = vmatprep.subr.mxu0 0.0
    %1797 = vmatpush2.msra.mxu0 0.0
    %1798 = vmatprep.subr.mxu0 0.0
    %1799 = vmatpush2.msra.mxu0 0.0
    %1800 = vmatprep.mubr.f32.mxu0 0.0
    %1801 = vmatmul.mubr.f32.gmra.mxu0 %v1714
    %v1802 = vpop.f32.mrf.mxu0
    %v1803 = vadd.f32 %v1735, %v1802
    %v1804 = vpop.f32.mrf.mxu0
    %1805 = vmatprep.mubr.f32.mxu0 0.0
    %1806 = vmatmul.mubr.f32.gmra.mxu0 %v1715
    %v1807 = vpop.f32.mrf.mxu0
    %v1808 = vadd.f32 %v1735, %v1807
    %v1809 = vpop.f32.mrf.mxu0
    %1810 = vdwg.mxu0
    %v1811 = vadd.f32 %v127, %v1690
    %v1812 = vadd.f32 %v128, %v1695
    %v1813 = vadd.f32 %v1811, %v1803
    %v1814 = vadd.f32 %v1812, %v1808
    %1817 = vrot.lane.b32.xlu0 %v127, 32
    %v1818 = vpop.permute.xlu0 %1817
    %1819 = vrot.lane.b32.xlu0 %v128, 32
    %v1820 = vpop.permute.xlu0 %1819
    %v1823 = vsel %vm39, %v1813, %v1818
    %v1824 = vsel %vm39, %v1814, %v1820
    %vm1825 = vcmask 523264
    %1826 = vst.msk [vmem:[#allocation2] sm:$0xff] %vm1825, %v1823
    %1827 = vst.msk [vmem:[#allocation2 + $0x8] sm:$0xff] %vm1825, %v1824
    // Predicated region
    $region30: #{tpu_custom_call.1} parent=1 // pred_check
      _
    $region31: #{tpu_custom_call.1} parent=1 // pred_check_branch
      %1829 = sbr.rel (0) target = $region33
    $region32: #{tpu_custom_call.1} parent=1 // pred_region
      %s1831 = ssub.s32 256, 256
      %1832 = vsyncadd [#allocation3], %s1831
      %s1833 = sshll.u32 [#allocation2], 4
      %s1834 = int_to_ptr.vmem [resolvable:$true] %s1833
      %1839 = dma.vmem_to_hbm [thread:$0]  %s1834, 256, %s7, [#allocation3], 128, 128, 8
    $region33: #{tpu_custom_call.1} parent=1 // pred_fallthru
      _
    // Predicated region
    $region34: #{tpu_custom_call.1} parent=1 // pred_check
      _
    $region35: #{tpu_custom_call.1} parent=1 // pred_check_branch
      %1841 = sbr.rel (0) target = $region37
    $region36: #{tpu_custom_call.1} parent=1 // pred_region
      %1842 = dma.done [#allocation3], 256
    $region37: #{tpu_custom_call.1} parent=1 // pred_fallthru
      _
    %1843 = vsyncpa [#allocation3], 1

</llo_original>
